<compile_context>
chip_gen: v7x
topology: tpu7x:2x2x1
jax: 0.10.0
libtpu: 0.0.40
codegen_flags: <defaults>
</compile_context>

<pallas_src>
import jax
import jax.numpy as jnp
from jax.experimental import pallas as pl
from jax.experimental.pallas import tpu as pltpu

HDIM = 256
STATE_DIM = 150
STATE_PAD = 256            # state features zero-padded to a lane-aligned 256
ZS_DIM = 256
OUT_SCALE = 20.0 * 1_000_000.0


def _round_up(x, m):
    return (x + m - 1) // m * m


def _actor_kernel(state_ref, zs_ref,
                  w1_ref, b1_ref,
                  wms_ref, wmz_ref, bm_ref,
                  wr1a_ref, br1a_ref, wr1b_ref, br1b_ref,
                  wr2a_ref, br2a_ref, wr2b_ref, br2b_ref,
                  wf_ref, bf_ref,
                  out_ref):
    bf16 = jnp.bfloat16
    f32 = jnp.float32

    # encoder1: Linear(STATE_PAD, 256) + ReLU   (bf16 MXU, f32 accumulate)
    x = state_ref[...].astype(bf16)
    h = jnp.dot(x, w1_ref[...], preferred_element_type=f32) + b1_ref[...]
    h = jnp.maximum(h, 0.0)

    # AvgL1Norm: x / clamp(mean(|x|, -1, keepdim), min=1e-8); EUP reciprocal
    denom = jnp.maximum(jnp.mean(jnp.abs(h), axis=-1, keepdims=True), 1e-8)
    h = h * pl.reciprocal(denom, approx=True)

    # fc_mid: Linear(512, 256) + ReLU on cat([h, zs], 1), concat-free split
    a = (jnp.dot(h.astype(bf16), wms_ref[...], preferred_element_type=f32)
         + jnp.dot(zs_ref[...].astype(bf16), wmz_ref[...],
                   preferred_element_type=f32)
         + bm_ref[...])
    a = jnp.maximum(a, 0.0)

    def leaky(v):  # nn.LeakyReLU default negative_slope = 0.01
        return jnp.where(v >= 0.0, v, 0.01 * v)

    def resblock(v, wa_ref, ba_ref, wb_ref, bb_ref):
        t = leaky(jnp.dot(v.astype(bf16), wa_ref[...],
                          preferred_element_type=f32) + ba_ref[...])
        t = leaky(jnp.dot(t.astype(bf16), wb_ref[...],
                          preferred_element_type=f32) + bb_ref[...])
        return t + v

    a = resblock(a, wr1a_ref, br1a_ref, wr1b_ref, br1b_ref)
    a = resblock(a, wr2a_ref, br2a_ref, wr2b_ref, br2b_ref)

    # final: Linear(256, 1) + Tanh, then * 2e7.  N=1 matmul replaced by a lane
    # reduction against wf stored as a (1, 256) row.
    o = jnp.sum(a * wf_ref[...], axis=-1, keepdims=True) + bf_ref[...]
    out_ref[...] = jnp.tanh(o) * OUT_SCALE


def actor_residual_forward(state, zs, params, *, batch_tile=512):
    """state: (B, 150) f32, zs: (B, 256) f32 -> (B, 1) f32."""
    B = state.shape[0]

    # Zero-pad the 150-feature axis to 256 lanes (w1 has matching zero rows).
    state = jnp.pad(state.astype(jnp.float32),
                    ((0, 0), (0, STATE_PAD - state.shape[1])))
    zs = zs.astype(jnp.float32)

    # Batch tile: big tiles amortize the ~0.35us/step grid overhead;
    # padded so the grid divides evenly.
    tb = min(batch_tile, _round_up(B, 8))
    bp = _round_up(B, tb)
    if bp != B:
        state = jnp.pad(state, ((0, bp - B), (0, 0)))
        zs = jnp.pad(zs, ((0, bp - B), (0, 0)))
    grid = (bp // tb,)

    def batch_spec(cols):
        return pl.BlockSpec((tb, cols), lambda i: (i, 0))

    def const_spec(arr):
        # Weights/biases: same block every grid step -> stays VMEM-resident.
        return pl.BlockSpec(arr.shape, lambda i: (0, 0))

    p = params
    args = (state, zs,
            p["w1"], p["b1"],
            p["wm_s"], p["wm_z"], p["bm"],
            p["wr1a"], p["br1a"], p["wr1b"], p["br1b"],
            p["wr2a"], p["br2a"], p["wr2b"], p["br2b"],
            p["wf"], p["bf"])
    in_specs = [batch_spec(STATE_PAD), batch_spec(ZS_DIM)] + \
               [const_spec(a) for a in args[2:]]

    out = pl.pallas_call(
        _actor_kernel,
        out_shape=jax.ShapeDtypeStruct((bp, 1), jnp.float32),
        grid=grid,
        in_specs=in_specs,
        out_specs=pl.BlockSpec((tb, 1), lambda i: (i, 0)),
        compiler_params=pltpu.CompilerParams(
            dimension_semantics=("parallel",),      # megacore sharding on v7x
            vmem_limit_bytes=32 * 1024 * 1024,      # ample headroom
        ),
    )(*args)
    return out[:B]


def init_params(key):
    """Deterministic synthetic parameters matching the module's Linear shapes.

    Matmul weights are stored as (in_features, out_features) = PyTorch
    weight^T, cast once to bfloat16. Biases are (1, out_features) float32.
    w1 is padded with zero rows from 150 -> 256 input features. The final
    layer weight is a (1, 256) float32 row (used as a lane reduction).
    """
    ks = jax.random.split(key, 16)
    s = 0.05
    f32, bf16 = jnp.float32, jnp.bfloat16

    def w(k, i, o):
        return (s * jax.random.normal(k, (i, o))).astype(f32)

    def b(k, o):
        return (s * jax.random.normal(k, (1, o))).astype(f32)

    w1 = jnp.zeros((STATE_PAD, HDIM), f32).at[:STATE_DIM].set(
        w(ks[0], STATE_DIM, HDIM))
    wm_full = w(ks[2], 2 * HDIM, HDIM)   # fc_mid weight^T, split on input axis

    return {
        "w1":   w1.astype(bf16),                     "b1":   b(ks[1], HDIM),
        "wm_s": wm_full[:HDIM].astype(bf16),
        "wm_z": wm_full[HDIM:].astype(bf16),         "bm":   b(ks[3], HDIM),
        "wr1a": w(ks[4], HDIM, HDIM).astype(bf16),   "br1a": b(ks[5], HDIM),
        "wr1b": w(ks[6], HDIM, HDIM).astype(bf16),   "br1b": b(ks[7], HDIM),
        "wr2a": w(ks[8], HDIM, HDIM).astype(bf16),   "br2a": b(ks[9], HDIM),
        "wr2b": w(ks[10], HDIM, HDIM).astype(bf16),  "br2b": b(ks[11], HDIM),
        "wf":   w(ks[12], 1, HDIM),                  # (1, 256) f32
        "bf":   b(ks[13], 1),                        # (1, 1)   f32
    }


def reference_forward(state, zs, p):
    """Pure-JAX reference mirroring the kernel's bf16-in / f32-accumulate math."""
    bf16, f32 = jnp.bfloat16, jnp.float32

    def dot(x, w):
        return jnp.dot(x.astype(bf16), w.astype(bf16),
                       preferred_element_type=f32)

    def leaky(v):
        return jnp.where(v >= 0.0, v, 0.01 * v)

    state = jnp.pad(state, ((0, 0), (0, STATE_PAD - state.shape[1])))
    h = jnp.maximum(dot(state, p["w1"]) + p["b1"], 0.0)
    h = h / jnp.maximum(jnp.mean(jnp.abs(h), axis=-1, keepdims=True), 1e-8)
    a = jnp.maximum(dot(h, p["wm_s"]) + dot(zs, p["wm_z"]) + p["bm"], 0.0)
    for wa, ba, wb, bb in (("wr1a", "br1a", "wr1b", "br1b"),
                           ("wr2a", "br2a", "wr2b", "br2b")):
        t = leaky(dot(a, p[wa]) + p[ba])
        t = leaky(dot(t, p[wb]) + p[bb])
        a = t + a
    o = jnp.sum(a * p["wf"], axis=-1, keepdims=True) + p["bf"]
    return jnp.tanh(o) * OUT_SCALE


if __name__ == "__main__":
    key = jax.random.PRNGKey(0)
    k_state, k_zs, k_params = jax.random.split(key, 3)

    # Small shapes: batch=48 with an explicit 32-row tile gives a 2-step grid
    # and exercises the batch-padding path (48 -> 64 rows). The feature sizes
    # (150 / 256) are fixed by the module.
    B = 48
    state = jax.random.normal(k_state, (B, STATE_DIM), dtype=jnp.float32)
    zs = jax.random.normal(k_zs, (B, ZS_DIM), dtype=jnp.float32)
    params = init_params(k_params)

    out = jax.block_until_ready(
        actor_residual_forward(state, zs, params, batch_tile=32))
    assert out.shape == (B, 1)

    ref = reference_forward(state, zs, params)
    scale = float(jnp.max(jnp.abs(ref))) + 1e-9
    rel_err = float(jnp.max(jnp.abs(out - ref))) / scale
    # Main divergence vs the matched-precision reference is the EUP approx
    # reciprocal (~2^-12 relative), far inside 1e-2 of full scale.
    assert rel_err < 1e-2, f"mismatch vs reference: rel_err={rel_err}"

    print("KERNEL_OK")
</pallas_src>

<mosaic_0001>
module attributes {stable_mosaic.version = 11 : i64} {
  func.func @_actor_kernel(%arg0: i32, %arg1: memref<32x256xf32, #tpu.memory_space<vmem>>, %arg2: memref<32x256xf32, #tpu.memory_space<vmem>>, %arg3: memref<256x256xbf16, #tpu.memory_space<vmem>>, %arg4: memref<1x256xf32, #tpu.memory_space<vmem>>, %arg5: memref<256x256xbf16, #tpu.memory_space<vmem>>, %arg6: memref<256x256xbf16, #tpu.memory_space<vmem>>, %arg7: memref<1x256xf32, #tpu.memory_space<vmem>>, %arg8: memref<256x256xbf16, #tpu.memory_space<vmem>>, %arg9: memref<1x256xf32, #tpu.memory_space<vmem>>, %arg10: memref<256x256xbf16, #tpu.memory_space<vmem>>, %arg11: memref<1x256xf32, #tpu.memory_space<vmem>>, %arg12: memref<256x256xbf16, #tpu.memory_space<vmem>>, %arg13: memref<1x256xf32, #tpu.memory_space<vmem>>, %arg14: memref<256x256xbf16, #tpu.memory_space<vmem>>, %arg15: memref<1x256xf32, #tpu.memory_space<vmem>>, %arg16: memref<1x256xf32, #tpu.memory_space<vmem>>, %arg17: memref<1x1xf32, #tpu.memory_space<vmem>>, %arg18: memref<32x1xf32, #tpu.memory_space<vmem>>) attributes {dimension_semantics = [#tpu.dimension_semantics<parallel>], iteration_bounds = array<i64: 2>, scalar_prefetch = 0 : i64, scratch_operands = 0 : i64, tpu.core_type = #tpu.core_type<tc>, window_params = [{transform_indices = @transform_0, window_bounds = array<i64: 32, 256>}, {transform_indices = @transform_1, window_bounds = array<i64: 32, 256>}, {pipeline_mode = #tpu.pipeline_mode<synchronous>, transform_indices = @transform_2, window_bounds = array<i64: 256, 256>}, {pipeline_mode = #tpu.pipeline_mode<synchronous>, transform_indices = @transform_3, window_bounds = array<i64: 1, 256>}, {pipeline_mode = #tpu.pipeline_mode<synchronous>, transform_indices = @transform_4, window_bounds = array<i64: 256, 256>}, {pipeline_mode = #tpu.pipeline_mode<synchronous>, transform_indices = @transform_5, window_bounds = array<i64: 256, 256>}, {pipeline_mode = #tpu.pipeline_mode<synchronous>, transform_indices = @transform_6, window_bounds = array<i64: 1, 256>}, {pipeline_mode = #tpu.pipeline_mode<synchronous>, transform_indices = @transform_7, window_bounds = array<i64: 256, 256>}, {pipeline_mode = #tpu.pipeline_mode<synchronous>, transform_indices = @transform_8, window_bounds = array<i64: 1, 256>}, {pipeline_mode = #tpu.pipeline_mode<synchronous>, transform_indices = @transform_9, window_bounds = array<i64: 256, 256>}, {pipeline_mode = #tpu.pipeline_mode<synchronous>, transform_indices = @transform_10, window_bounds = array<i64: 1, 256>}, {pipeline_mode = #tpu.pipeline_mode<synchronous>, transform_indices = @transform_11, window_bounds = array<i64: 256, 256>}, {pipeline_mode = #tpu.pipeline_mode<synchronous>, transform_indices = @transform_12, window_bounds = array<i64: 1, 256>}, {pipeline_mode = #tpu.pipeline_mode<synchronous>, transform_indices = @transform_13, window_bounds = array<i64: 256, 256>}, {pipeline_mode = #tpu.pipeline_mode<synchronous>, transform_indices = @transform_14, window_bounds = array<i64: 1, 256>}, {pipeline_mode = #tpu.pipeline_mode<synchronous>, transform_indices = @transform_15, window_bounds = array<i64: 1, 256>}, {pipeline_mode = #tpu.pipeline_mode<synchronous>, transform_indices = @transform_16, window_bounds = array<i64: 1, 1>}, {transform_indices = @transform_17, window_bounds = array<i64: 32, 1>}]} {
    %c0 = arith.constant 0 : index
    %c0_0 = arith.constant 0 : index
    %0 = vector.load %arg1[%c0, %c0_0] : memref<32x256xf32, #tpu.memory_space<vmem>>, vector<32x256xf32>
    %1 = arith.truncf %0 : vector<32x256xf32> to vector<32x256xbf16>
    %c0_1 = arith.constant 0 : index
    %c0_2 = arith.constant 0 : index
    %2 = vector.load %arg3[%c0_1, %c0_2] : memref<256x256xbf16, #tpu.memory_space<vmem>>, vector<256x256xbf16>
    %cst = arith.constant dense<0.000000e+00> : vector<32x256xf32>
    %3 = tpu.matmul %1, %2, %cst {dimension_numbers = #tpu.dot_dimension_numbers<[1], [0], [0], [1], [0, 0, 1, 1], [], []>} : vector<32x256xbf16>, vector<256x256xbf16>, vector<32x256xf32> -> vector<32x256xf32>
    %c0_3 = arith.constant 0 : index
    %c0_4 = arith.constant 0 : index
    %4 = vector.load %arg4[%c0_3, %c0_4] : memref<1x256xf32, #tpu.memory_space<vmem>>, vector<1x256xf32>
    %5 = vector.broadcast %4 : vector<1x256xf32> to vector<32x256xf32>
    %6 = arith.addf %3, %5 : vector<32x256xf32>
    %cst_5 = arith.constant 0.000000e+00 : f32
    %7 = vector.broadcast %cst_5 : f32 to vector<32x256xf32>
    %8 = arith.maximumf %6, %7 : vector<32x256xf32>
    %9 = math.absf %8 : vector<32x256xf32>
    %cst_6 = arith.constant dense<0.000000e+00> : vector<32xf32>
    %10 = vector.multi_reduction <add>, %9, %cst_6 [1] : vector<32x256xf32> to vector<32xf32>
    %11 = vector.shape_cast %10 : vector<32xf32> to vector<32x1xf32>
    %cst_7 = arith.constant 2.560000e+02 : f32
    %12 = vector.broadcast %cst_7 : f32 to vector<32x1xf32>
    %13 = arith.divf %11, %12 : vector<32x1xf32>
    %cst_8 = arith.constant 9.99999993E-9 : f32
    %14 = vector.broadcast %cst_8 : f32 to vector<32x1xf32>
    %15 = arith.maximumf %13, %14 : vector<32x1xf32>
    %16 = tpu.reciprocal %15 {approx = true} : vector<32x1xf32> -> vector<32x1xf32>
    %17 = vector.broadcast %16 : vector<32x1xf32> to vector<32x256xf32>
    %18 = arith.mulf %8, %17 : vector<32x256xf32>
    %19 = arith.truncf %18 : vector<32x256xf32> to vector<32x256xbf16>
    %c0_9 = arith.constant 0 : index
    %c0_10 = arith.constant 0 : index
    %20 = vector.load %arg5[%c0_9, %c0_10] : memref<256x256xbf16, #tpu.memory_space<vmem>>, vector<256x256xbf16>
    %cst_11 = arith.constant dense<0.000000e+00> : vector<32x256xf32>
    %21 = tpu.matmul %19, %20, %cst_11 {dimension_numbers = #tpu.dot_dimension_numbers<[1], [0], [0], [1], [0, 0, 1, 1], [], []>} : vector<32x256xbf16>, vector<256x256xbf16>, vector<32x256xf32> -> vector<32x256xf32>
    %c0_12 = arith.constant 0 : index
    %c0_13 = arith.constant 0 : index
    %22 = vector.load %arg2[%c0_12, %c0_13] : memref<32x256xf32, #tpu.memory_space<vmem>>, vector<32x256xf32>
    %23 = arith.truncf %22 : vector<32x256xf32> to vector<32x256xbf16>
    %c0_14 = arith.constant 0 : index
    %c0_15 = arith.constant 0 : index
    %24 = vector.load %arg6[%c0_14, %c0_15] : memref<256x256xbf16, #tpu.memory_space<vmem>>, vector<256x256xbf16>
    %cst_16 = arith.constant dense<0.000000e+00> : vector<32x256xf32>
    %25 = tpu.matmul %23, %24, %cst_16 {dimension_numbers = #tpu.dot_dimension_numbers<[1], [0], [0], [1], [0, 0, 1, 1], [], []>} : vector<32x256xbf16>, vector<256x256xbf16>, vector<32x256xf32> -> vector<32x256xf32>
    %26 = arith.addf %21, %25 : vector<32x256xf32>
    %c0_17 = arith.constant 0 : index
    %c0_18 = arith.constant 0 : index
    %27 = vector.load %arg7[%c0_17, %c0_18] : memref<1x256xf32, #tpu.memory_space<vmem>>, vector<1x256xf32>
    %28 = vector.broadcast %27 : vector<1x256xf32> to vector<32x256xf32>
    %29 = arith.addf %26, %28 : vector<32x256xf32>
    %cst_19 = arith.constant 0.000000e+00 : f32
    %30 = vector.broadcast %cst_19 : f32 to vector<32x256xf32>
    %31 = arith.maximumf %29, %30 : vector<32x256xf32>
    %32 = arith.truncf %31 : vector<32x256xf32> to vector<32x256xbf16>
    %c0_20 = arith.constant 0 : index
    %c0_21 = arith.constant 0 : index
    %33 = vector.load %arg8[%c0_20, %c0_21] : memref<256x256xbf16, #tpu.memory_space<vmem>>, vector<256x256xbf16>
    %cst_22 = arith.constant dense<0.000000e+00> : vector<32x256xf32>
    %34 = tpu.matmul %32, %33, %cst_22 {dimension_numbers = #tpu.dot_dimension_numbers<[1], [0], [0], [1], [0, 0, 1, 1], [], []>} : vector<32x256xbf16>, vector<256x256xbf16>, vector<32x256xf32> -> vector<32x256xf32>
    %c0_23 = arith.constant 0 : index
    %c0_24 = arith.constant 0 : index
    %35 = vector.load %arg9[%c0_23, %c0_24] : memref<1x256xf32, #tpu.memory_space<vmem>>, vector<1x256xf32>
    %36 = vector.broadcast %35 : vector<1x256xf32> to vector<32x256xf32>
    %37 = arith.addf %34, %36 : vector<32x256xf32>
    %cst_25 = arith.constant 0.000000e+00 : f32
    %38 = vector.broadcast %cst_25 : f32 to vector<32x256xf32>
    %39 = arith.cmpf oge, %37, %38 : vector<32x256xf32>
    %cst_26 = arith.constant 0.00999999977 : f32
    %40 = vector.broadcast %cst_26 : f32 to vector<32x256xf32>
    %41 = arith.mulf %40, %37 : vector<32x256xf32>
    %42 = arith.select %39, %37, %41 : vector<32x256xi1>, vector<32x256xf32>
    %43 = arith.truncf %42 : vector<32x256xf32> to vector<32x256xbf16>
    %c0_27 = arith.constant 0 : index
    %c0_28 = arith.constant 0 : index
    %44 = vector.load %arg10[%c0_27, %c0_28] : memref<256x256xbf16, #tpu.memory_space<vmem>>, vector<256x256xbf16>
    %cst_29 = arith.constant dense<0.000000e+00> : vector<32x256xf32>
    %45 = tpu.matmul %43, %44, %cst_29 {dimension_numbers = #tpu.dot_dimension_numbers<[1], [0], [0], [1], [0, 0, 1, 1], [], []>} : vector<32x256xbf16>, vector<256x256xbf16>, vector<32x256xf32> -> vector<32x256xf32>
    %c0_30 = arith.constant 0 : index
    %c0_31 = arith.constant 0 : index
    %46 = vector.load %arg11[%c0_30, %c0_31] : memref<1x256xf32, #tpu.memory_space<vmem>>, vector<1x256xf32>
    %47 = vector.broadcast %46 : vector<1x256xf32> to vector<32x256xf32>
    %48 = arith.addf %45, %47 : vector<32x256xf32>
    %cst_32 = arith.constant 0.000000e+00 : f32
    %49 = vector.broadcast %cst_32 : f32 to vector<32x256xf32>
    %50 = arith.cmpf oge, %48, %49 : vector<32x256xf32>
    %cst_33 = arith.constant 0.00999999977 : f32
    %51 = vector.broadcast %cst_33 : f32 to vector<32x256xf32>
    %52 = arith.mulf %51, %48 : vector<32x256xf32>
    %53 = arith.select %50, %48, %52 : vector<32x256xi1>, vector<32x256xf32>
    %54 = arith.addf %53, %31 : vector<32x256xf32>
    %55 = arith.truncf %54 : vector<32x256xf32> to vector<32x256xbf16>
    %c0_34 = arith.constant 0 : index
    %c0_35 = arith.constant 0 : index
    %56 = vector.load %arg12[%c0_34, %c0_35] : memref<256x256xbf16, #tpu.memory_space<vmem>>, vector<256x256xbf16>
    %cst_36 = arith.constant dense<0.000000e+00> : vector<32x256xf32>
    %57 = tpu.matmul %55, %56, %cst_36 {dimension_numbers = #tpu.dot_dimension_numbers<[1], [0], [0], [1], [0, 0, 1, 1], [], []>} : vector<32x256xbf16>, vector<256x256xbf16>, vector<32x256xf32> -> vector<32x256xf32>
    %c0_37 = arith.constant 0 : index
    %c0_38 = arith.constant 0 : index
    %58 = vector.load %arg13[%c0_37, %c0_38] : memref<1x256xf32, #tpu.memory_space<vmem>>, vector<1x256xf32>
    %59 = vector.broadcast %58 : vector<1x256xf32> to vector<32x256xf32>
    %60 = arith.addf %57, %59 : vector<32x256xf32>
    %cst_39 = arith.constant 0.000000e+00 : f32
    %61 = vector.broadcast %cst_39 : f32 to vector<32x256xf32>
    %62 = arith.cmpf oge, %60, %61 : vector<32x256xf32>
    %cst_40 = arith.constant 0.00999999977 : f32
    %63 = vector.broadcast %cst_40 : f32 to vector<32x256xf32>
    %64 = arith.mulf %63, %60 : vector<32x256xf32>
    %65 = arith.select %62, %60, %64 : vector<32x256xi1>, vector<32x256xf32>
    %66 = arith.truncf %65 : vector<32x256xf32> to vector<32x256xbf16>
    %c0_41 = arith.constant 0 : index
    %c0_42 = arith.constant 0 : index
    %67 = vector.load %arg14[%c0_41, %c0_42] : memref<256x256xbf16, #tpu.memory_space<vmem>>, vector<256x256xbf16>
    %cst_43 = arith.constant dense<0.000000e+00> : vector<32x256xf32>
    %68 = tpu.matmul %66, %67, %cst_43 {dimension_numbers = #tpu.dot_dimension_numbers<[1], [0], [0], [1], [0, 0, 1, 1], [], []>} : vector<32x256xbf16>, vector<256x256xbf16>, vector<32x256xf32> -> vector<32x256xf32>
    %c0_44 = arith.constant 0 : index
    %c0_45 = arith.constant 0 : index
    %69 = vector.load %arg15[%c0_44, %c0_45] : memref<1x256xf32, #tpu.memory_space<vmem>>, vector<1x256xf32>
    %70 = vector.broadcast %69 : vector<1x256xf32> to vector<32x256xf32>
    %71 = arith.addf %68, %70 : vector<32x256xf32>
    %cst_46 = arith.constant 0.000000e+00 : f32
    %72 = vector.broadcast %cst_46 : f32 to vector<32x256xf32>
    %73 = arith.cmpf oge, %71, %72 : vector<32x256xf32>
    %cst_47 = arith.constant 0.00999999977 : f32
    %74 = vector.broadcast %cst_47 : f32 to vector<32x256xf32>
    %75 = arith.mulf %74, %71 : vector<32x256xf32>
    %76 = arith.select %73, %71, %75 : vector<32x256xi1>, vector<32x256xf32>
    %77 = arith.addf %76, %54 : vector<32x256xf32>
    %c0_48 = arith.constant 0 : index
    %c0_49 = arith.constant 0 : index
    %78 = vector.load %arg16[%c0_48, %c0_49] : memref<1x256xf32, #tpu.memory_space<vmem>>, vector<1x256xf32>
    %79 = vector.broadcast %78 : vector<1x256xf32> to vector<32x256xf32>
    %80 = arith.mulf %77, %79 : vector<32x256xf32>
    %cst_50 = arith.constant dense<0.000000e+00> : vector<32xf32>
    %81 = vector.multi_reduction <add>, %80, %cst_50 [1] : vector<32x256xf32> to vector<32xf32>
    %82 = vector.shape_cast %81 : vector<32xf32> to vector<32x1xf32>
    %c0_51 = arith.constant 0 : index
    %c0_52 = arith.constant 0 : index
    %83 = vector.load %arg17[%c0_51, %c0_52] : memref<1x1xf32, #tpu.memory_space<vmem>>, vector<1x1xf32>
    %84 = vector.broadcast %83 : vector<1x1xf32> to vector<32x1xf32>
    %85 = arith.addf %82, %84 : vector<32x1xf32>
    %86 = math.tanh %85 : vector<32x1xf32>
    %cst_53 = arith.constant 2.000000e+07 : f32
    %87 = vector.broadcast %cst_53 : f32 to vector<32x1xf32>
    %88 = arith.mulf %86, %87 : vector<32x1xf32>
    %c0_54 = arith.constant 0 : index
    %c0_55 = arith.constant 0 : index
    %89 = vector.load %arg18[%c0_54, %c0_55] : memref<32x1xf32, #tpu.memory_space<vmem>>, vector<32x1xf32>
    tpu.vector_store %arg18[%c0_54, %c0_55], %88 {strides = array<i32>} : memref<32x1xf32, #tpu.memory_space<vmem>>, vector<32x1xf32>,
    return
  }
  func.func @transform_0(%arg0: i32) -> (i32, i32) {
    %c0_i32 = arith.constant 0 : i32
    %c0_i32_0 = arith.constant 0 : i32
    return %arg0, %c0_i32 : i32, i32
  }
  func.func @transform_1(%arg0: i32) -> (i32, i32) {
    %c0_i32 = arith.constant 0 : i32
    %c0_i32_0 = arith.constant 0 : i32
    return %arg0, %c0_i32 : i32, i32
  }
  func.func @transform_2(%arg0: i32) -> (i32, i32) {
    %c0_i32 = arith.constant 0 : i32
    %c0_i32_0 = arith.constant 0 : i32
    %c0_i32_1 = arith.constant 0 : i32
    return %c0_i32, %c0_i32_0 : i32, i32
  }
  func.func @transform_3(%arg0: i32) -> (i32, i32) {
    %c0_i32 = arith.constant 0 : i32
    %c0_i32_0 = arith.constant 0 : i32
    %c0_i32_1 = arith.constant 0 : i32
    return %c0_i32, %c0_i32_0 : i32, i32
  }
  func.func @transform_4(%arg0: i32) -> (i32, i32) {
    %c0_i32 = arith.constant 0 : i32
    %c0_i32_0 = arith.constant 0 : i32
    %c0_i32_1 = arith.constant 0 : i32
    return %c0_i32, %c0_i32_0 : i32, i32
  }
  func.func @transform_5(%arg0: i32) -> (i32, i32) {
    %c0_i32 = arith.constant 0 : i32
    %c0_i32_0 = arith.constant 0 : i32
    %c0_i32_1 = arith.constant 0 : i32
    return %c0_i32, %c0_i32_0 : i32, i32
  }
  func.func @transform_6(%arg0: i32) -> (i32, i32) {
    %c0_i32 = arith.constant 0 : i32
    %c0_i32_0 = arith.constant 0 : i32
    %c0_i32_1 = arith.constant 0 : i32
    return %c0_i32, %c0_i32_0 : i32, i32
  }
  func.func @transform_7(%arg0: i32) -> (i32, i32) {
    %c0_i32 = arith.constant 0 : i32
    %c0_i32_0 = arith.constant 0 : i32
    %c0_i32_1 = arith.constant 0 : i32
    return %c0_i32, %c0_i32_0 : i32, i32
  }
  func.func @transform_8(%arg0: i32) -> (i32, i32) {
    %c0_i32 = arith.constant 0 : i32
    %c0_i32_0 = arith.constant 0 : i32
    %c0_i32_1 = arith.constant 0 : i32
    return %c0_i32, %c0_i32_0 : i32, i32
  }
  func.func @transform_9(%arg0: i32) -> (i32, i32) {
    %c0_i32 = arith.constant 0 : i32
    %c0_i32_0 = arith.constant 0 : i32
    %c0_i32_1 = arith.constant 0 : i32
    return %c0_i32, %c0_i32_0 : i32, i32
  }
  func.func @transform_10(%arg0: i32) -> (i32, i32) {
    %c0_i32 = arith.constant 0 : i32
    %c0_i32_0 = arith.constant 0 : i32
    %c0_i32_1 = arith.constant 0 : i32
    return %c0_i32, %c0_i32_0 : i32, i32
  }
  func.func @transform_11(%arg0: i32) -> (i32, i32) {
    %c0_i32 = arith.constant 0 : i32
    %c0_i32_0 = arith.constant 0 : i32
    %c0_i32_1 = arith.constant 0 : i32
    return %c0_i32, %c0_i32_0 : i32, i32
  }
  func.func @transform_12(%arg0: i32) -> (i32, i32) {
    %c0_i32 = arith.constant 0 : i32
    %c0_i32_0 = arith.constant 0 : i32
    %c0_i32_1 = arith.constant 0 : i32
    return %c0_i32, %c0_i32_0 : i32, i32
  }
  func.func @transform_13(%arg0: i32) -> (i32, i32) {
    %c0_i32 = arith.constant 0 : i32
    %c0_i32_0 = arith.constant 0 : i32
    %c0_i32_1 = arith.constant 0 : i32
    return %c0_i32, %c0_i32_0 : i32, i32
  }
  func.func @transform_14(%arg0: i32) -> (i32, i32) {
    %c0_i32 = arith.constant 0 : i32
    %c0_i32_0 = arith.constant 0 : i32
    %c0_i32_1 = arith.constant 0 : i32
    return %c0_i32, %c0_i32_0 : i32, i32
  }
  func.func @transform_15(%arg0: i32) -> (i32, i32) {
    %c0_i32 = arith.constant 0 : i32
    %c0_i32_0 = arith.constant 0 : i32
    %c0_i32_1 = arith.constant 0 : i32
    return %c0_i32, %c0_i32_0 : i32, i32
  }
  func.func @transform_16(%arg0: i32) -> (i32, i32) {
    %c0_i32 = arith.constant 0 : i32
    %c0_i32_0 = arith.constant 0 : i32
    %c0_i32_1 = arith.constant 0 : i32
    return %c0_i32, %c0_i32_0 : i32, i32
  }
  func.func @transform_17(%arg0: i32) -> (i32, i32) {
    %c0_i32 = arith.constant 0 : i32
    %c0_i32_0 = arith.constant 0 : i32
    return %arg0, %c0_i32 : i32, i32
  }
}

</mosaic_0001>

<llo_original>
// kernel: tpu_custom_call.1
$region0: #{tpu_custom_call.1}
  #allocation0 [shape = 'u32[]', space=smem, size = 0x4, offset = 0x4, fixed_abs, tag = 'smem constant byte address 0x4 - core index']
  #allocation1 [shape = 'u32[144,128]{1,0:T(1,128)}', space=vmem, size = 0x12000, scoped, tag = 'internal scratch']
  #allocation2 [shape = 'f32[1,1]{1,0:T(1,128)S(1)}', space=vmem, size = 0x200, scoped, tag = 'scoped memory for tpu_custom_call.1']
  %s0 = inlined_call_operand.hbm [shape: f32[64,256], index: 0, kind: input, shape index: {}]
  %s1 = inlined_call_operand.hbm [shape: f32[64,256], index: 1, kind: input, shape index: {}]
  %s2 = inlined_call_operand.hbm [shape: bf16[256,256], index: 2, kind: input, shape index: {}]
  %s3 = inlined_call_operand.vmem [shape: f32[1,256], index: 3, kind: input, shape index: {}]
  %s4 = inlined_call_operand.hbm [shape: bf16[256,256], index: 4, kind: input, shape index: {}]
  %s5 = inlined_call_operand.hbm [shape: bf16[256,256], index: 5, kind: input, shape index: {}]
  %s6 = inlined_call_operand.vmem [shape: f32[1,256], index: 6, kind: input, shape index: {}]
  %s7 = inlined_call_operand.hbm [shape: bf16[256,256], index: 7, kind: input, shape index: {}]
  %s8 = inlined_call_operand.vmem [shape: f32[1,256], index: 8, kind: input, shape index: {}]
  %s9 = inlined_call_operand.hbm [shape: bf16[256,256], index: 9, kind: input, shape index: {}]
  %s10 = inlined_call_operand.vmem [shape: f32[1,256], index: 10, kind: input, shape index: {}]
  %s11 = inlined_call_operand.hbm [shape: bf16[256,256], index: 11, kind: input, shape index: {}]
  %s12 = inlined_call_operand.vmem [shape: f32[1,256], index: 12, kind: input, shape index: {}]
  %s13 = inlined_call_operand.hbm [shape: bf16[256,256], index: 13, kind: input, shape index: {}]
  %s14 = inlined_call_operand.vmem [shape: f32[1,256], index: 14, kind: input, shape index: {}]
  %s15 = inlined_call_operand.vmem [shape: f32[1,256], index: 15, kind: input, shape index: {}]
  %s16 = inlined_call_operand.<no memory space> [shape: f32[1,1], index: 16, kind: input, shape index: {}]
  %s17 = inlined_call_operand.vmem [shape: f32[64,1], index: 17, kind: output, shape index: {}]
  %s18 = sld [smem:[#allocation0]]
  $region137: #{tpu_custom_call.1} parent=0
    _
  %s20 = ssub.s32 1, %s18
  %s21 = scalar_select 0, %s20, %s18
  %v22 = vstv %s16
  %23 = vst [vmem:[#allocation2] sm:$0x1] %v22
  $region1: #{tpu_custom_call.1} parent=0
    #allocation3 [shape = 'u8[65536]{0}', space=vmem, size = 0x10000, scoped, tag = 'input window, operand 0']
    #allocation4 [shape = 's32[2]{0}', space=sflag, size = 0x8, scoped, tag = 'scoped memory for tpu_custom_call.1']
    #allocation5 [shape = 'u8[65536]{0}', space=vmem, size = 0x10000, scoped, tag = 'input window, operand 1']
    #allocation6 [shape = 's32[2]{0}', space=sflag, size = 0x8, scoped, tag = 'scoped memory for tpu_custom_call.1']
    #allocation7 [shape = 'u8[131072]{0}', space=vmem, size = 0x20000, scoped, tag = 'input window, operand 2, single buffered']
    #allocation8 [shape = 'u8[131072]{0}', space=vmem, size = 0x20000, scoped, tag = 'input window, operand 4, single buffered']
    #allocation9 [shape = 's32[1]{0}', space=sflag, size = 0x4, scoped, tag = 'scoped memory for tpu_custom_call.1']
    #allocation10 [shape = 'u8[131072]{0}', space=vmem, size = 0x20000, scoped, tag = 'input window, operand 5, single buffered']
    #allocation11 [shape = 'u8[131072]{0}', space=vmem, size = 0x20000, scoped, tag = 'input window, operand 7, single buffered']
    #allocation12 [shape = 's32[1]{0}', space=sflag, size = 0x4, scoped, tag = 'scoped memory for tpu_custom_call.1']
    #allocation13 [shape = 'u8[131072]{0}', space=vmem, size = 0x20000, scoped, tag = 'input window, operand 9, single buffered']
    #allocation14 [shape = 'u8[131072]{0}', space=vmem, size = 0x20000, scoped, tag = 'input window, operand 11, single buffered']
    #allocation15 [shape = 's32[1]{0}', space=sflag, size = 0x4, scoped, tag = 'scoped memory for tpu_custom_call.1']
    #allocation16 [shape = 'u8[131072]{0}', space=vmem, size = 0x20000, scoped, tag = 'input window, operand 13, single buffered']
    %24 = vsyncpa [#allocation4], 0
    %s25 = scalar_lea.sflag [#allocation4], 1
    %26 = vsyncpa %s25, 0
    %27 = vsyncpa [#allocation6], 0
    %s28 = scalar_lea.sflag [#allocation6], 1
    %29 = vsyncpa %s28, 0
    %30 = vsyncpa [#allocation9], 0
    %31 = vsyncpa [#allocation12], 0
    %32 = vsyncpa [#allocation15], 0
    loop: start=0, step=1, limit=4
    $region2: #{tpu_custom_call.1} parent=1 // loop_pre_header
      _
    $region3: #{tpu_custom_call.1} parent=1 // loop_header
      %s34 = sphi 0, %s38
      %p35 = scmp.ge.s32.totalorder %s34, 4
      %s44 = sphi 0, %s46
      %s47 = sphi 0, %s44
      %s48 = sphi 0, %s47
      %s64 = sphi 0, %s48
      %s70 = sphi 0, %s72
      %s73 = sphi 0, %s70
      %s74 = sphi 0, %s73
      %s90 = sphi 0, %s74
      %s94 = sphi 0, %s94
      %s96 = sphi 0, %s94
      %s97 = sphi 0, %s96
      %s111 = sphi 0, %s97
      %s115 = sphi 0, %s115
      %s117 = sphi 0, %s115
      %s118 = sphi 0, %s117
      %s132 = sphi 0, %s118
      %s136 = sphi 0, %s136
      %s138 = sphi 0, %s136
      %s139 = sphi 0, %s138
      %s153 = sphi 0, %s139
      %s157 = sphi 0, %s157
      %s159 = sphi 0, %s157
      %s160 = sphi 0, %s159
      %s174 = sphi 0, %s160
      %s178 = sphi 0, %s178
      %s180 = sphi 0, %s178
      %s181 = sphi 0, %s180
      %s195 = sphi 0, %s181
      %s199 = sphi 0, %s199
      %s201 = sphi 0, %s199
      %s202 = sphi 0, %s201
      %s216 = sphi 0, %s202
      %s220 = sphi 0, %s220
      %s222 = sphi 0, %s220
      %s223 = sphi 0, %s222
      %s237 = sphi 0, %s223
      %s241 = sphi 0, %s241
      %s243 = sphi 0, %s241
      %s244 = sphi 0, %s243
      %s258 = sphi 0, %s244
      %s262 = sphi 0, %s262
      %s264 = sphi 0, %s262
      %s265 = sphi 0, %s264
      %s279 = sphi 0, %s265
      %s283 = sphi 0, %s283
      %s285 = sphi 0, %s283
      %s286 = sphi 0, %s285
      %s300 = sphi 0, %s286
      %s304 = sphi 0, %s304
      %s306 = sphi 0, %s304
      %s307 = sphi 0, %s306
      %s321 = sphi 0, %s307
      %s325 = sphi 0, %s325
      %s327 = sphi 0, %s325
      %s328 = sphi 0, %s327
      %s342 = sphi 0, %s328
      %s346 = sphi 0, %s346
      %s348 = sphi 0, %s346
      %s349 = sphi 0, %s348
      %s363 = sphi 0, %s349
      %s367 = sphi 0, %s367
      %s369 = sphi 0, %s367
      %s370 = sphi 0, %s369
      %s384 = sphi 0, %s370
      %s388 = sphi 0, %s388
      %s390 = sphi 0, %s388
      %s391 = sphi 0, %s390
      %s405 = sphi 0, %s391
      %s411 = sphi 0, %s413
      %s414 = sphi 0, %s411
      %s415 = sphi 0, %s414
      %s431 = sphi 0, %s415
    $region4: #{tpu_custom_call.1} parent=1 // loop_header_branch
      %37 = sbr.rel (%p35) target = $region8
    $region5: #{tpu_custom_call.1} parent=1 // loop_body
      %s39 = ssub.s32 %s34, 1
      %s40 = ssub.s32 %s34, 2
      %s41 = sadd.s32 %s34, 1
      %s42 = ssub.s32 %s34, %s41
      %p43 = scmp.eq.s32.totalorder %s42, 0
      %s45 = sadd.s32 %s44, 1
      %s46 = scalar_select %p43, %s44, %s45
      %p49 = pneg %p43
      %p50 = scmp.eq.s32.totalorder %s34, 1
      %p51 = por %p49, %p50
      %p52 = scmp.ne.s32.totalorder %s44, %s47
      %p53 = scmp.eq.s32.totalorder %s34, 0
      %p54 = por %p52, %p53
      %p55 = scmp.ne.s32.totalorder %s44, %s47
      %p56 = scmp.eq.s32.totalorder %s39, 1
      %p57 = por %p55, %p56
      %p58 = scmp.ne.s32.totalorder %s47, %s48
      %p59 = scmp.eq.s32.totalorder %s39, 0
      %p60 = por %p58, %p59
      %p61 = scmp.ne.s32.totalorder %s47, %s48
      %p62 = scmp.eq.s32.totalorder %s40, 1
      %p63 = por %p61, %p62
      %p65 = scmp.ne.s32.totalorder %s48, %s64
      %p66 = scmp.eq.s32.totalorder %s40, 0
      %p67 = por %p65, %p66
      %s68 = ssub.s32 %s34, %s41
      %p69 = scmp.eq.s32.totalorder %s68, 0
      %s71 = sadd.s32 %s70, 1
      %s72 = scalar_select %p69, %s70, %s71
      %p75 = pneg %p69
      %p76 = scmp.eq.s32.totalorder %s34, 1
      %p77 = por %p75, %p76
      %p78 = scmp.ne.s32.totalorder %s70, %s73
      %p79 = scmp.eq.s32.totalorder %s34, 0
      %p80 = por %p78, %p79
      %p81 = scmp.ne.s32.totalorder %s70, %s73
      %p82 = scmp.eq.s32.totalorder %s39, 1
      %p83 = por %p81, %p82
      %p84 = scmp.ne.s32.totalorder %s73, %s74
      %p85 = scmp.eq.s32.totalorder %s39, 0
      %p86 = por %p84, %p85
      %p87 = scmp.ne.s32.totalorder %s73, %s74
      %p88 = scmp.eq.s32.totalorder %s40, 1
      %p89 = por %p87, %p88
      %p91 = scmp.ne.s32.totalorder %s74, %s90
      %p92 = scmp.eq.s32.totalorder %s40, 0
      %p93 = por %p91, %p92
      %s95 = sadd.s32 %s94, 1
      %p98 = scmp.eq.s32.totalorder %s34, 1
      %p99 = scmp.ne.s32.totalorder %s94, %s96
      %p100 = scmp.eq.s32.totalorder %s34, 0
      %p101 = por %p99, %p100
      %p102 = scmp.ne.s32.totalorder %s94, %s96
      %p103 = scmp.eq.s32.totalorder %s39, 1
      %p104 = por %p102, %p103
      %p105 = scmp.ne.s32.totalorder %s96, %s97
      %p106 = scmp.eq.s32.totalorder %s39, 0
      %p107 = por %p105, %p106
      %p108 = scmp.ne.s32.totalorder %s96, %s97
      %p109 = scmp.eq.s32.totalorder %s40, 1
      %p110 = por %p108, %p109
      %p112 = scmp.ne.s32.totalorder %s97, %s111
      %p113 = scmp.eq.s32.totalorder %s40, 0
      %p114 = por %p112, %p113
      %s116 = sadd.s32 %s115, 1
      %p119 = scmp.eq.s32.totalorder %s34, 1
      %p120 = scmp.ne.s32.totalorder %s115, %s117
      %p121 = scmp.eq.s32.totalorder %s34, 0
      %p122 = por %p120, %p121
      %p123 = scmp.ne.s32.totalorder %s115, %s117
      %p124 = scmp.eq.s32.totalorder %s39, 1
      %p125 = por %p123, %p124
      %p126 = scmp.ne.s32.totalorder %s117, %s118
      %p127 = scmp.eq.s32.totalorder %s39, 0
      %p128 = por %p126, %p127
      %p129 = scmp.ne.s32.totalorder %s117, %s118
      %p130 = scmp.eq.s32.totalorder %s40, 1
      %p131 = por %p129, %p130
      %p133 = scmp.ne.s32.totalorder %s118, %s132
      %p134 = scmp.eq.s32.totalorder %s40, 0
      %p135 = por %p133, %p134
      %s137 = sadd.s32 %s136, 1
      %p140 = scmp.eq.s32.totalorder %s34, 1
      %p141 = scmp.ne.s32.totalorder %s136, %s138
      %p142 = scmp.eq.s32.totalorder %s34, 0
      %p143 = por %p141, %p142
      %p144 = scmp.ne.s32.totalorder %s136, %s138
      %p145 = scmp.eq.s32.totalorder %s39, 1
      %p146 = por %p144, %p145
      %p147 = scmp.ne.s32.totalorder %s138, %s139
      %p148 = scmp.eq.s32.totalorder %s39, 0
      %p149 = por %p147, %p148
      %p150 = scmp.ne.s32.totalorder %s138, %s139
      %p151 = scmp.eq.s32.totalorder %s40, 1
      %p152 = por %p150, %p151
      %p154 = scmp.ne.s32.totalorder %s139, %s153
      %p155 = scmp.eq.s32.totalorder %s40, 0
      %p156 = por %p154, %p155
      %s158 = sadd.s32 %s157, 1
      %p161 = scmp.eq.s32.totalorder %s34, 1
      %p162 = scmp.ne.s32.totalorder %s157, %s159
      %p163 = scmp.eq.s32.totalorder %s34, 0
      %p164 = por %p162, %p163
      %p165 = scmp.ne.s32.totalorder %s157, %s159
      %p166 = scmp.eq.s32.totalorder %s39, 1
      %p167 = por %p165, %p166
      %p168 = scmp.ne.s32.totalorder %s159, %s160
      %p169 = scmp.eq.s32.totalorder %s39, 0
      %p170 = por %p168, %p169
      %p171 = scmp.ne.s32.totalorder %s159, %s160
      %p172 = scmp.eq.s32.totalorder %s40, 1
      %p173 = por %p171, %p172
      %p175 = scmp.ne.s32.totalorder %s160, %s174
      %p176 = scmp.eq.s32.totalorder %s40, 0
      %p177 = por %p175, %p176
      %s179 = sadd.s32 %s178, 1
      %p182 = scmp.eq.s32.totalorder %s34, 1
      %p183 = scmp.ne.s32.totalorder %s178, %s180
      %p184 = scmp.eq.s32.totalorder %s34, 0
      %p185 = por %p183, %p184
      %p186 = scmp.ne.s32.totalorder %s178, %s180
      %p187 = scmp.eq.s32.totalorder %s39, 1
      %p188 = por %p186, %p187
      %p189 = scmp.ne.s32.totalorder %s180, %s181
      %p190 = scmp.eq.s32.totalorder %s39, 0
      %p191 = por %p189, %p190
      %p192 = scmp.ne.s32.totalorder %s180, %s181
      %p193 = scmp.eq.s32.totalorder %s40, 1
      %p194 = por %p192, %p193
      %p196 = scmp.ne.s32.totalorder %s181, %s195
      %p197 = scmp.eq.s32.totalorder %s40, 0
      %p198 = por %p196, %p197
      %s200 = sadd.s32 %s199, 1
      %p203 = scmp.eq.s32.totalorder %s34, 1
      %p204 = scmp.ne.s32.totalorder %s199, %s201
      %p205 = scmp.eq.s32.totalorder %s34, 0
      %p206 = por %p204, %p205
      %p207 = scmp.ne.s32.totalorder %s199, %s201
      %p208 = scmp.eq.s32.totalorder %s39, 1
      %p209 = por %p207, %p208
      %p210 = scmp.ne.s32.totalorder %s201, %s202
      %p211 = scmp.eq.s32.totalorder %s39, 0
      %p212 = por %p210, %p211
      %p213 = scmp.ne.s32.totalorder %s201, %s202
      %p214 = scmp.eq.s32.totalorder %s40, 1
      %p215 = por %p213, %p214
      %p217 = scmp.ne.s32.totalorder %s202, %s216
      %p218 = scmp.eq.s32.totalorder %s40, 0
      %p219 = por %p217, %p218
      %s221 = sadd.s32 %s220, 1
      %p224 = scmp.eq.s32.totalorder %s34, 1
      %p225 = scmp.ne.s32.totalorder %s220, %s222
      %p226 = scmp.eq.s32.totalorder %s34, 0
      %p227 = por %p225, %p226
      %p228 = scmp.ne.s32.totalorder %s220, %s222
      %p229 = scmp.eq.s32.totalorder %s39, 1
      %p230 = por %p228, %p229
      %p231 = scmp.ne.s32.totalorder %s222, %s223
      %p232 = scmp.eq.s32.totalorder %s39, 0
      %p233 = por %p231, %p232
      %p234 = scmp.ne.s32.totalorder %s222, %s223
      %p235 = scmp.eq.s32.totalorder %s40, 1
      %p236 = por %p234, %p235
      %p238 = scmp.ne.s32.totalorder %s223, %s237
      %p239 = scmp.eq.s32.totalorder %s40, 0
      %p240 = por %p238, %p239
      %s242 = sadd.s32 %s241, 1
      %p245 = scmp.eq.s32.totalorder %s34, 1
      %p246 = scmp.ne.s32.totalorder %s241, %s243
      %p247 = scmp.eq.s32.totalorder %s34, 0
      %p248 = por %p246, %p247
      %p249 = scmp.ne.s32.totalorder %s241, %s243
      %p250 = scmp.eq.s32.totalorder %s39, 1
      %p251 = por %p249, %p250
      %p252 = scmp.ne.s32.totalorder %s243, %s244
      %p253 = scmp.eq.s32.totalorder %s39, 0
      %p254 = por %p252, %p253
      %p255 = scmp.ne.s32.totalorder %s243, %s244
      %p256 = scmp.eq.s32.totalorder %s40, 1
      %p257 = por %p255, %p256
      %p259 = scmp.ne.s32.totalorder %s244, %s258
      %p260 = scmp.eq.s32.totalorder %s40, 0
      %p261 = por %p259, %p260
      %s263 = sadd.s32 %s262, 1
      %p266 = scmp.eq.s32.totalorder %s34, 1
      %p267 = scmp.ne.s32.totalorder %s262, %s264
      %p268 = scmp.eq.s32.totalorder %s34, 0
      %p269 = por %p267, %p268
      %p270 = scmp.ne.s32.totalorder %s262, %s264
      %p271 = scmp.eq.s32.totalorder %s39, 1
      %p272 = por %p270, %p271
      %p273 = scmp.ne.s32.totalorder %s264, %s265
      %p274 = scmp.eq.s32.totalorder %s39, 0
      %p275 = por %p273, %p274
      %p276 = scmp.ne.s32.totalorder %s264, %s265
      %p277 = scmp.eq.s32.totalorder %s40, 1
      %p278 = por %p276, %p277
      %p280 = scmp.ne.s32.totalorder %s265, %s279
      %p281 = scmp.eq.s32.totalorder %s40, 0
      %p282 = por %p280, %p281
      %s284 = sadd.s32 %s283, 1
      %p287 = scmp.eq.s32.totalorder %s34, 1
      %p288 = scmp.ne.s32.totalorder %s283, %s285
      %p289 = scmp.eq.s32.totalorder %s34, 0
      %p290 = por %p288, %p289
      %p291 = scmp.ne.s32.totalorder %s283, %s285
      %p292 = scmp.eq.s32.totalorder %s39, 1
      %p293 = por %p291, %p292
      %p294 = scmp.ne.s32.totalorder %s285, %s286
      %p295 = scmp.eq.s32.totalorder %s39, 0
      %p296 = por %p294, %p295
      %p297 = scmp.ne.s32.totalorder %s285, %s286
      %p298 = scmp.eq.s32.totalorder %s40, 1
      %p299 = por %p297, %p298
      %p301 = scmp.ne.s32.totalorder %s286, %s300
      %p302 = scmp.eq.s32.totalorder %s40, 0
      %p303 = por %p301, %p302
      %s305 = sadd.s32 %s304, 1
      %p308 = scmp.eq.s32.totalorder %s34, 1
      %p309 = scmp.ne.s32.totalorder %s304, %s306
      %p310 = scmp.eq.s32.totalorder %s34, 0
      %p311 = por %p309, %p310
      %p312 = scmp.ne.s32.totalorder %s304, %s306
      %p313 = scmp.eq.s32.totalorder %s39, 1
      %p314 = por %p312, %p313
      %p315 = scmp.ne.s32.totalorder %s306, %s307
      %p316 = scmp.eq.s32.totalorder %s39, 0
      %p317 = por %p315, %p316
      %p318 = scmp.ne.s32.totalorder %s306, %s307
      %p319 = scmp.eq.s32.totalorder %s40, 1
      %p320 = por %p318, %p319
      %p322 = scmp.ne.s32.totalorder %s307, %s321
      %p323 = scmp.eq.s32.totalorder %s40, 0
      %p324 = por %p322, %p323
      %s326 = sadd.s32 %s325, 1
      %p329 = scmp.eq.s32.totalorder %s34, 1
      %p330 = scmp.ne.s32.totalorder %s325, %s327
      %p331 = scmp.eq.s32.totalorder %s34, 0
      %p332 = por %p330, %p331
      %p333 = scmp.ne.s32.totalorder %s325, %s327
      %p334 = scmp.eq.s32.totalorder %s39, 1
      %p335 = por %p333, %p334
      %p336 = scmp.ne.s32.totalorder %s327, %s328
      %p337 = scmp.eq.s32.totalorder %s39, 0
      %p338 = por %p336, %p337
      %p339 = scmp.ne.s32.totalorder %s327, %s328
      %p340 = scmp.eq.s32.totalorder %s40, 1
      %p341 = por %p339, %p340
      %p343 = scmp.ne.s32.totalorder %s328, %s342
      %p344 = scmp.eq.s32.totalorder %s40, 0
      %p345 = por %p343, %p344
      %s347 = sadd.s32 %s346, 1
      %p350 = scmp.eq.s32.totalorder %s34, 1
      %p351 = scmp.ne.s32.totalorder %s346, %s348
      %p352 = scmp.eq.s32.totalorder %s34, 0
      %p353 = por %p351, %p352
      %p354 = scmp.ne.s32.totalorder %s346, %s348
      %p355 = scmp.eq.s32.totalorder %s39, 1
      %p356 = por %p354, %p355
      %p357 = scmp.ne.s32.totalorder %s348, %s349
      %p358 = scmp.eq.s32.totalorder %s39, 0
      %p359 = por %p357, %p358
      %p360 = scmp.ne.s32.totalorder %s348, %s349
      %p361 = scmp.eq.s32.totalorder %s40, 1
      %p362 = por %p360, %p361
      %p364 = scmp.ne.s32.totalorder %s349, %s363
      %p365 = scmp.eq.s32.totalorder %s40, 0
      %p366 = por %p364, %p365
      %s368 = sadd.s32 %s367, 1
      %p371 = scmp.eq.s32.totalorder %s34, 1
      %p372 = scmp.ne.s32.totalorder %s367, %s369
      %p373 = scmp.eq.s32.totalorder %s34, 0
      %p374 = por %p372, %p373
      %p375 = scmp.ne.s32.totalorder %s367, %s369
      %p376 = scmp.eq.s32.totalorder %s39, 1
      %p377 = por %p375, %p376
      %p378 = scmp.ne.s32.totalorder %s369, %s370
      %p379 = scmp.eq.s32.totalorder %s39, 0
      %p380 = por %p378, %p379
      %p381 = scmp.ne.s32.totalorder %s369, %s370
      %p382 = scmp.eq.s32.totalorder %s40, 1
      %p383 = por %p381, %p382
      %p385 = scmp.ne.s32.totalorder %s370, %s384
      %p386 = scmp.eq.s32.totalorder %s40, 0
      %p387 = por %p385, %p386
      %s389 = sadd.s32 %s388, 1
      %p392 = scmp.eq.s32.totalorder %s34, 1
      %p393 = scmp.ne.s32.totalorder %s388, %s390
      %p394 = scmp.eq.s32.totalorder %s34, 0
      %p395 = por %p393, %p394
      %p396 = scmp.ne.s32.totalorder %s388, %s390
      %p397 = scmp.eq.s32.totalorder %s39, 1
      %p398 = por %p396, %p397
      %p399 = scmp.ne.s32.totalorder %s390, %s391
      %p400 = scmp.eq.s32.totalorder %s39, 0
      %p401 = por %p399, %p400
      %p402 = scmp.ne.s32.totalorder %s390, %s391
      %p403 = scmp.eq.s32.totalorder %s40, 1
      %p404 = por %p402, %p403
      %p406 = scmp.ne.s32.totalorder %s391, %s405
      %p407 = scmp.eq.s32.totalorder %s40, 0
      %p408 = por %p406, %p407
      %s409 = ssub.s32 %s34, %s41
      %p410 = scmp.eq.s32.totalorder %s409, 0
      %s412 = sadd.s32 %s411, 1
      %s413 = scalar_select %p410, %s411, %s412
      %p416 = pneg %p410
      %p417 = scmp.eq.s32.totalorder %s34, 1
      %p418 = por %p416, %p417
      %p419 = scmp.ne.s32.totalorder %s411, %s414
      %p420 = scmp.eq.s32.totalorder %s34, 0
      %p421 = por %p419, %p420
      %p422 = scmp.ne.s32.totalorder %s411, %s414
      %p423 = scmp.eq.s32.totalorder %s39, 1
      %p424 = por %p422, %p423
      %p425 = scmp.ne.s32.totalorder %s414, %s415
      %p426 = scmp.eq.s32.totalorder %s39, 0
      %p427 = por %p425, %p426
      %p428 = scmp.ne.s32.totalorder %s414, %s415
      %p429 = scmp.eq.s32.totalorder %s40, 1
      %p430 = por %p428, %p429
      %p432 = scmp.ne.s32.totalorder %s415, %s431
      %p433 = scmp.eq.s32.totalorder %s40, 0
      %p434 = por %p432, %p433
      %p435 = scmp.le.s32.totalorder 1, %s34
      %p436 = scmp.lt.s32.totalorder %s34, 3
      %p437 = pnand %p435, %p436
      %p438 = pneg %p437
      // Predicated region
      $region9: #{tpu_custom_call.1} parent=5 // pred_check
        _
      $region10: #{tpu_custom_call.1} parent=5 // pred_check_branch
        %440 = sbr.rel (%p437) target = $region12
      $region11: #{tpu_custom_call.1} parent=5 // pred_region
        %s441 = ssub.s32 %s34, 1
        // Predicated region
        $region13: #{tpu_custom_call.1} parent=11 // pred_check
          %p442 = pneg %p107
        $region14: #{tpu_custom_call.1} parent=11 // pred_check_branch
          %444 = sbr.rel (%p442) target = $region16
        $region15: #{tpu_custom_call.1} parent=11 // pred_region
          %s446 = ssub.s32 4096, 4096
          %447 = vsyncadd [#allocation6], %s446
          %s448 = sshll.u32 [#allocation7], 4
          %s449 = int_to_ptr.vmem [resolvable:$true] %s448
          %454 = dma.hbm_to_vmem [thread:$0]  %s2, 4096, %s449, [#allocation6], 128, 128, 8
        $region16: #{tpu_custom_call.1} parent=11 // pred_fallthru
          _
        // Predicated region
        $region17: #{tpu_custom_call.1} parent=11 // pred_check
          %p455 = pneg %p128
        $region18: #{tpu_custom_call.1} parent=11 // pred_check_branch
          %457 = sbr.rel (%p455) target = $region20
        $region19: #{tpu_custom_call.1} parent=11 // pred_region
          _
        $region20: #{tpu_custom_call.1} parent=11 // pred_fallthru
          _
        // Predicated region
        $region21: #{tpu_custom_call.1} parent=11 // pred_check
          %p458 = pneg %p149
        $region22: #{tpu_custom_call.1} parent=11 // pred_check_branch
          %460 = sbr.rel (%p458) target = $region24
        $region23: #{tpu_custom_call.1} parent=11 // pred_region
          %s462 = ssub.s32 4096, 4096
          %463 = vsyncadd [#allocation9], %s462
          %s464 = sshll.u32 [#allocation8], 4
          %s465 = int_to_ptr.vmem [resolvable:$true] %s464
          %470 = dma.hbm_to_vmem [thread:$0]  %s4, 4096, %s465, [#allocation9], 128, 128, 8
        $region24: #{tpu_custom_call.1} parent=11 // pred_fallthru
          _
        // Predicated region
        $region25: #{tpu_custom_call.1} parent=11 // pred_check
          %p471 = pneg %p170
        $region26: #{tpu_custom_call.1} parent=11 // pred_check_branch
          %473 = sbr.rel (%p471) target = $region28
        $region27: #{tpu_custom_call.1} parent=11 // pred_region
          %s475 = ssub.s32 4096, 4096
          %476 = vsyncadd [#allocation9], %s475
          %s477 = sshll.u32 [#allocation10], 4
          %s478 = int_to_ptr.vmem [resolvable:$true] %s477
          %483 = dma.hbm_to_vmem [thread:$0]  %s5, 4096, %s478, [#allocation9], 128, 128, 8
        $region28: #{tpu_custom_call.1} parent=11 // pred_fallthru
          _
        // Predicated region
        $region29: #{tpu_custom_call.1} parent=11 // pred_check
          %p484 = pneg %p191
        $region30: #{tpu_custom_call.1} parent=11 // pred_check_branch
          %486 = sbr.rel (%p484) target = $region32
        $region31: #{tpu_custom_call.1} parent=11 // pred_region
          _
        $region32: #{tpu_custom_call.1} parent=11 // pred_fallthru
          _
        // Predicated region
        $region33: #{tpu_custom_call.1} parent=11 // pred_check
          %p487 = pneg %p212
        $region34: #{tpu_custom_call.1} parent=11 // pred_check_branch
          %489 = sbr.rel (%p487) target = $region36
        $region35: #{tpu_custom_call.1} parent=11 // pred_region
          %s491 = ssub.s32 4096, 4096
          %492 = vsyncadd [#allocation12], %s491
          %s493 = sshll.u32 [#allocation11], 4
          %s494 = int_to_ptr.vmem [resolvable:$true] %s493
          %499 = dma.hbm_to_vmem [thread:$0]  %s7, 4096, %s494, [#allocation12], 128, 128, 8
        $region36: #{tpu_custom_call.1} parent=11 // pred_fallthru
          _
        // Predicated region
        $region37: #{tpu_custom_call.1} parent=11 // pred_check
          %p500 = pneg %p233
        $region38: #{tpu_custom_call.1} parent=11 // pred_check_branch
          %502 = sbr.rel (%p500) target = $region40
        $region39: #{tpu_custom_call.1} parent=11 // pred_region
          _
        $region40: #{tpu_custom_call.1} parent=11 // pred_fallthru
          _
        // Predicated region
        $region41: #{tpu_custom_call.1} parent=11 // pred_check
          %p503 = pneg %p254
        $region42: #{tpu_custom_call.1} parent=11 // pred_check_branch
          %505 = sbr.rel (%p503) target = $region44
        $region43: #{tpu_custom_call.1} parent=11 // pred_region
          %s507 = ssub.s32 4096, 4096
          %508 = vsyncadd [#allocation12], %s507
          %s509 = sshll.u32 [#allocation13], 4
          %s510 = int_to_ptr.vmem [resolvable:$true] %s509
          %515 = dma.hbm_to_vmem [thread:$0]  %s9, 4096, %s510, [#allocation12], 128, 128, 8
        $region44: #{tpu_custom_call.1} parent=11 // pred_fallthru
          _
        // Predicated region
        $region45: #{tpu_custom_call.1} parent=11 // pred_check
          %p516 = pneg %p275
        $region46: #{tpu_custom_call.1} parent=11 // pred_check_branch
          %518 = sbr.rel (%p516) target = $region48
        $region47: #{tpu_custom_call.1} parent=11 // pred_region
          _
        $region48: #{tpu_custom_call.1} parent=11 // pred_fallthru
          _
        // Predicated region
        $region49: #{tpu_custom_call.1} parent=11 // pred_check
          %p519 = pneg %p296
        $region50: #{tpu_custom_call.1} parent=11 // pred_check_branch
          %521 = sbr.rel (%p519) target = $region52
        $region51: #{tpu_custom_call.1} parent=11 // pred_region
          %s523 = ssub.s32 4096, 4096
          %524 = vsyncadd [#allocation15], %s523
          %s525 = sshll.u32 [#allocation14], 4
          %s526 = int_to_ptr.vmem [resolvable:$true] %s525
          %531 = dma.hbm_to_vmem [thread:$0]  %s11, 4096, %s526, [#allocation15], 128, 128, 8
        $region52: #{tpu_custom_call.1} parent=11 // pred_fallthru
          _
        // Predicated region
        $region53: #{tpu_custom_call.1} parent=11 // pred_check
          %p532 = pneg %p317
        $region54: #{tpu_custom_call.1} parent=11 // pred_check_branch
          %534 = sbr.rel (%p532) target = $region56
        $region55: #{tpu_custom_call.1} parent=11 // pred_region
          _
        $region56: #{tpu_custom_call.1} parent=11 // pred_fallthru
          _
        // Predicated region
        $region57: #{tpu_custom_call.1} parent=11 // pred_check
          %p535 = pneg %p338
        $region58: #{tpu_custom_call.1} parent=11 // pred_check_branch
          %537 = sbr.rel (%p535) target = $region60
        $region59: #{tpu_custom_call.1} parent=11 // pred_region
          %s539 = ssub.s32 4096, 4096
          %540 = vsyncadd [#allocation15], %s539
          %s541 = sshll.u32 [#allocation16], 4
          %s542 = int_to_ptr.vmem [resolvable:$true] %s541
          %547 = dma.hbm_to_vmem [thread:$0]  %s13, 4096, %s542, [#allocation15], 128, 128, 8
        $region60: #{tpu_custom_call.1} parent=11 // pred_fallthru
          _
        // Predicated region
        $region61: #{tpu_custom_call.1} parent=11 // pred_check
          %p548 = pneg %p359
        $region62: #{tpu_custom_call.1} parent=11 // pred_check_branch
          %550 = sbr.rel (%p548) target = $region64
        $region63: #{tpu_custom_call.1} parent=11 // pred_region
          _
        $region64: #{tpu_custom_call.1} parent=11 // pred_fallthru
          _
        // Predicated region
        $region65: #{tpu_custom_call.1} parent=11 // pred_check
          %p551 = pneg %p380
        $region66: #{tpu_custom_call.1} parent=11 // pred_check_branch
          %553 = sbr.rel (%p551) target = $region68
        $region67: #{tpu_custom_call.1} parent=11 // pred_region
          _
        $region68: #{tpu_custom_call.1} parent=11 // pred_fallthru
          _
        // Predicated region
        $region69: #{tpu_custom_call.1} parent=11 // pred_check
          %p554 = pneg %p401
        $region70: #{tpu_custom_call.1} parent=11 // pred_check_branch
          %556 = sbr.rel (%p554) target = $region72
        $region71: #{tpu_custom_call.1} parent=11 // pred_region
          _
        $region72: #{tpu_custom_call.1} parent=11 // pred_fallthru
          _
      $region12: #{tpu_custom_call.1} parent=5 // pred_fallthru
        _
      %p557 = scmp.lt.s32.totalorder %s34, 2
      // Predicated region
      $region73: #{tpu_custom_call.1} parent=5 // pred_check
        %p558 = pneg %p557
      $region74: #{tpu_custom_call.1} parent=5 // pred_check_branch
        %560 = sbr.rel (%p558) target = $region76
      $region75: #{tpu_custom_call.1} parent=5 // pred_region
        // Predicated region
        $region77: #{tpu_custom_call.1} parent=75 // pred_check
          %p561 = pneg %p54
        $region78: #{tpu_custom_call.1} parent=75 // pred_check_branch
          %563 = sbr.rel (%p561) target = $region80
        $region79: #{tpu_custom_call.1} parent=75 // pred_region
          %s564 = sand.u32 %s44, 1
          %s565 = scalar_lea.sflag [#allocation4], %s564
          %s566 = sand.u32 %s44, 1
          %s567 = smul.addr %s566, 64
          %s568 = scalar_lea.vmem [#allocation3], %s567
          %s569 = smul.u32 4, %s34
          %s571 = ssub.s32 1024, 1024
          %572 = vsyncadd %s565, %s571
          %s573 = smul.addr %s569, 2
          %s574 = smul.addr %s573, 128
          %s575 = scalar_lea.hbm %s0, %s574
          %s576 = sshll.u32 %s568, 4
          %s577 = int_to_ptr.vmem [resolvable:$true] %s576
          %582 = dma.hbm_to_vmem [thread:$0]  %s575, 1024, %s577, %s565, 256, 256, 16
        $region80: #{tpu_custom_call.1} parent=75 // pred_fallthru
          _
        // Predicated region
        $region81: #{tpu_custom_call.1} parent=75 // pred_check
          %p583 = pneg %p80
        $region82: #{tpu_custom_call.1} parent=75 // pred_check_branch
          %585 = sbr.rel (%p583) target = $region84
        $region83: #{tpu_custom_call.1} parent=75 // pred_region
          %s586 = sand.u32 %s34, 1
          %s587 = scalar_lea.sflag [#allocation6], %s586
          %s588 = sand.u32 %s70, 1
          %s589 = smul.addr %s588, 64
          %s590 = scalar_lea.vmem [#allocation5], %s589
          %s591 = smul.u32 4, %s34
          %s593 = ssub.s32 1024, 1024
          %594 = vsyncadd %s587, %s593
          %s595 = smul.addr %s591, 2
          %s596 = smul.addr %s595, 128
          %s597 = scalar_lea.hbm %s1, %s596
          %s598 = sshll.u32 %s590, 4
          %s599 = int_to_ptr.vmem [resolvable:$true] %s598
          %604 = dma.hbm_to_vmem [thread:$0]  %s597, 1024, %s599, %s587, 256, 256, 16
        $region84: #{tpu_custom_call.1} parent=75 // pred_fallthru
          _
      $region76: #{tpu_custom_call.1} parent=5 // pred_fallthru
        _
      %p605 = scmp.le.s32.totalorder 1, %s34
      %p606 = scmp.lt.s32.totalorder %s34, 3
      %p607 = pnand %p605, %p606
      %p608 = pneg %p607
      // Predicated region
      $region85: #{tpu_custom_call.1} parent=5 // pred_check
        _
      $region86: #{tpu_custom_call.1} parent=5 // pred_check_branch
        %610 = sbr.rel (%p607) target = $region88
      $region87: #{tpu_custom_call.1} parent=5 // pred_region
        %s611 = ssub.s32 %s34, 1
        %s612 = sand.u32 %s47, 1
        %s613 = scalar_lea.sflag [#allocation4], %s612
        %s614 = sand.u32 %s47, 1
        %s615 = smul.addr %s614, 64
        %s616 = scalar_lea.vmem [#allocation3], %s615
        // Predicated region
        $region89: #{tpu_custom_call.1} parent=87 // pred_check
          %p617 = pneg %p60
        $region90: #{tpu_custom_call.1} parent=87 // pred_check_branch
          %619 = sbr.rel (%p617) target = $region92
        $region91: #{tpu_custom_call.1} parent=87 // pred_region
          %620 = dma.done %s613, 1024
        $region92: #{tpu_custom_call.1} parent=87 // pred_fallthru
          _
        %s621 = sand.u32 %s39, 1
        %s622 = scalar_lea.sflag [#allocation6], %s621
        %s623 = sand.u32 %s73, 1
        %s624 = smul.addr %s623, 64
        %s625 = scalar_lea.vmem [#allocation5], %s624
        // Predicated region
        $region93: #{tpu_custom_call.1} parent=87 // pred_check
          %p626 = pneg %p86
        $region94: #{tpu_custom_call.1} parent=87 // pred_check_branch
          %628 = sbr.rel (%p626) target = $region96
        $region95: #{tpu_custom_call.1} parent=87 // pred_region
          %629 = dma.done %s622, 1024
        $region96: #{tpu_custom_call.1} parent=87 // pred_fallthru
          _
        // Predicated region
        $region97: #{tpu_custom_call.1} parent=87 // pred_check
          %p630 = pneg %p107
        $region98: #{tpu_custom_call.1} parent=87 // pred_check_branch
          %632 = sbr.rel (%p630) target = $region100
        $region99: #{tpu_custom_call.1} parent=87 // pred_region
          %633 = dma.done [#allocation6], 4096
        $region100: #{tpu_custom_call.1} parent=87 // pred_fallthru
          _
        // Predicated region
        $region101: #{tpu_custom_call.1} parent=87 // pred_check
          %p634 = pneg %p149
        $region102: #{tpu_custom_call.1} parent=87 // pred_check_branch
          %636 = sbr.rel (%p634) target = $region104
        $region103: #{tpu_custom_call.1} parent=87 // pred_region
          %637 = dma.done [#allocation9], 4096
        $region104: #{tpu_custom_call.1} parent=87 // pred_fallthru
          _
        // Predicated region
        $region105: #{tpu_custom_call.1} parent=87 // pred_check
          %p638 = pneg %p170
        $region106: #{tpu_custom_call.1} parent=87 // pred_check_branch
          %640 = sbr.rel (%p638) target = $region108
        $region107: #{tpu_custom_call.1} parent=87 // pred_region
          %641 = dma.done [#allocation9], 4096
        $region108: #{tpu_custom_call.1} parent=87 // pred_fallthru
          _
        // Predicated region
        $region109: #{tpu_custom_call.1} parent=87 // pred_check
          %p642 = pneg %p212
        $region110: #{tpu_custom_call.1} parent=87 // pred_check_branch
          %644 = sbr.rel (%p642) target = $region112
        $region111: #{tpu_custom_call.1} parent=87 // pred_region
          %645 = dma.done [#allocation12], 4096
        $region112: #{tpu_custom_call.1} parent=87 // pred_fallthru
          _
        // Predicated region
        $region113: #{tpu_custom_call.1} parent=87 // pred_check
          %p646 = pneg %p254
        $region114: #{tpu_custom_call.1} parent=87 // pred_check_branch
          %648 = sbr.rel (%p646) target = $region116
        $region115: #{tpu_custom_call.1} parent=87 // pred_region
          %649 = dma.done [#allocation12], 4096
        $region116: #{tpu_custom_call.1} parent=87 // pred_fallthru
          _
        // Predicated region
        $region117: #{tpu_custom_call.1} parent=87 // pred_check
          %p650 = pneg %p296
        $region118: #{tpu_custom_call.1} parent=87 // pred_check_branch
          %652 = sbr.rel (%p650) target = $region120
        $region119: #{tpu_custom_call.1} parent=87 // pred_region
          %653 = dma.done [#allocation15], 4096
        $region120: #{tpu_custom_call.1} parent=87 // pred_fallthru
          _
        // Predicated region
        $region121: #{tpu_custom_call.1} parent=87 // pred_check
          %p654 = pneg %p338
        $region122: #{tpu_custom_call.1} parent=87 // pred_check_branch
          %656 = sbr.rel (%p654) target = $region124
        $region123: #{tpu_custom_call.1} parent=87 // pred_region
          %657 = dma.done [#allocation15], 4096
        $region124: #{tpu_custom_call.1} parent=87 // pred_fallthru
          _
        %s658 = sand.u32 %s47, 1
        %s659 = scalar_lea.sflag [#allocation4], %s658
        %s660 = sand.u32 %s47, 1
        %s661 = smul.addr %s660, 64
        %s662 = scalar_lea.vmem [#allocation3], %s661
        %p663 = pneg %p60
        %p664 = pneg %p57
        %s665 = sand.u32 %s39, 1
        %s666 = scalar_lea.sflag [#allocation6], %s665
        %s667 = sand.u32 %s73, 1
        %s668 = smul.addr %s667, 64
        %s669 = scalar_lea.vmem [#allocation5], %s668
        %p670 = pneg %p86
        %p671 = pneg %p83
        %p672 = pneg %p107
        %p673 = pneg %p104
        %p674 = pneg %p128
        %p675 = pneg %p125
        %p676 = pneg %p149
        %p677 = pneg %p146
        %p678 = pneg %p170
        %p679 = pneg %p167
        %p680 = pneg %p191
        %p681 = pneg %p188
        %p682 = pneg %p212
        %p683 = pneg %p209
        %p684 = pneg %p233
        %p685 = pneg %p230
        %p686 = pneg %p254
        %p687 = pneg %p251
        %p688 = pneg %p275
        %p689 = pneg %p272
        %p690 = pneg %p296
        %p691 = pneg %p293
        %p692 = pneg %p317
        %p693 = pneg %p314
        %p694 = pneg %p338
        %p695 = pneg %p335
        %p696 = pneg %p359
        %p697 = pneg %p356
        %p698 = pneg %p380
        %p699 = pneg %p377
        %p700 = pneg %p401
        %p701 = pneg %p398
        %p702 = pneg %p427
        %p703 = pneg %p424
        %s704 = smul.u32 4, %s39
        %p705 = scmp.lt.s32.totalorder %s704, 7
        %s706 = scalar_select %p705, %s704, 7
        %s707 = smul.addr %s706, 8
        %s708 = scalar_lea.vmem %s17, %s707
        %s709 = smul.u32 4, %s39
        %s710 = smul.u32 4, %s39
        %s711 = smul.u32 4, %s39
        %p712 = scmp.lt.s32.totalorder %s711, 7
        %s713 = scalar_select %p712, %s711, 7
        %s714 = smul.addr %s713, 8
        %s715 = scalar_lea.vmem %s17, %s714
        %s716 = smul.u32 4, %s39
        %v717 = vld [vmem:[%s616] sm:$0xff]
        %v718 = vld [vmem:[%s616 + $0x8] sm:$0xff]
        %v719 = vld [vmem:[%s616 + $0x10] sm:$0xff]
        %v720 = vld [vmem:[%s616 + $0x18] sm:$0xff]
        %v721 = vld [vmem:[%s616 + $0x20] sm:$0xff]
        %v722 = vld [vmem:[%s616 + $0x28] sm:$0xff]
        %v723 = vld [vmem:[%s616 + $0x30] sm:$0xff]
        %v724 = vld [vmem:[%s616 + $0x38] sm:$0xff]
        %v725 = vpack.c.bf16 %v719, %v717
        %v726 = vpack.c.bf16 %v720, %v718
        %v727 = vpack.c.bf16 %v723, %v721
        %v728 = vpack.c.bf16 %v724, %v722
        %v729 = vld [vmem:[#allocation7] sm:$0xff]
        %v730 = vld [vmem:[#allocation7 + $0x8] sm:$0xff]
        %v731 = vld [vmem:[#allocation7 + $0x10] sm:$0xff]
        %v732 = vld [vmem:[#allocation7 + $0x18] sm:$0xff]
        %v733 = vld [vmem:[#allocation7 + $0x20] sm:$0xff]
        %v734 = vld [vmem:[#allocation7 + $0x28] sm:$0xff]
        %v735 = vld [vmem:[#allocation7 + $0x30] sm:$0xff]
        %v736 = vld [vmem:[#allocation7 + $0x38] sm:$0xff]
        %v737 = vld [vmem:[#allocation7 + $0x40] sm:$0xff]
        %v738 = vld [vmem:[#allocation7 + $0x48] sm:$0xff]
        %v739 = vld [vmem:[#allocation7 + $0x50] sm:$0xff]
        %v740 = vld [vmem:[#allocation7 + $0x58] sm:$0xff]
        %v741 = vld [vmem:[#allocation7 + $0x60] sm:$0xff]
        %v742 = vld [vmem:[#allocation7 + $0x68] sm:$0xff]
        %v743 = vld [vmem:[#allocation7 + $0x70] sm:$0xff]
        %v744 = vld [vmem:[#allocation7 + $0x78] sm:$0xff]
        %v745 = vld [vmem:[#allocation7 + $0x80] sm:$0xff]
        %v746 = vld [vmem:[#allocation7 + $0x88] sm:$0xff]
        %v747 = vld [vmem:[#allocation7 + $0x90] sm:$0xff]
        %v748 = vld [vmem:[#allocation7 + $0x98] sm:$0xff]
        %v749 = vld [vmem:[#allocation7 + $0xa0] sm:$0xff]
        %v750 = vld [vmem:[#allocation7 + $0xa8] sm:$0xff]
        %v751 = vld [vmem:[#allocation7 + $0xb0] sm:$0xff]
        %v752 = vld [vmem:[#allocation7 + $0xb8] sm:$0xff]
        %v753 = vld [vmem:[#allocation7 + $0xc0] sm:$0xff]
        %v754 = vld [vmem:[#allocation7 + $0xc8] sm:$0xff]
        %v755 = vld [vmem:[#allocation7 + $0xd0] sm:$0xff]
        %v756 = vld [vmem:[#allocation7 + $0xd8] sm:$0xff]
        %v757 = vld [vmem:[#allocation7 + $0xe0] sm:$0xff]
        %v758 = vld [vmem:[#allocation7 + $0xe8] sm:$0xff]
        %v759 = vld [vmem:[#allocation7 + $0xf0] sm:$0xff]
        %v760 = vld [vmem:[#allocation7 + $0xf8] sm:$0xff]
        %v761 = vld [vmem:[%s3] sm:$0x3]
        %v763 = vlaneseq
        %v764 = vshrl.u32 %v763, 7
        %v765 = vsub.s32 0, %v764
        %v766 = vrot.slane %v761, %v765
        %v767 = vlaneseq
        %v768 = vshrl.u32 %v767, 7
        %v769 = vsub.s32 1, %v768
        %v770 = vrot.slane %v761, %v769
        %v805 = vunpack.c.l.b16 %v729
        %v806 = vunpack.c.h.b16 %v729
        %v807 = vunpack.c.l.b16 %v730
        %v808 = vunpack.c.h.b16 %v730
        %v809 = vunpack.c.l.b16 %v731
        %v810 = vunpack.c.h.b16 %v731
        %v811 = vunpack.c.l.b16 %v732
        %v812 = vunpack.c.h.b16 %v732
        %v813 = vunpack.c.l.b16 %v733
        %v814 = vunpack.c.h.b16 %v733
        %v815 = vunpack.c.l.b16 %v734
        %v816 = vunpack.c.h.b16 %v734
        %v817 = vunpack.c.l.b16 %v735
        %v818 = vunpack.c.h.b16 %v735
        %v819 = vunpack.c.l.b16 %v736
        %v820 = vunpack.c.h.b16 %v736
        %v821 = vunpack.c.l.b16 %v737
        %v822 = vunpack.c.h.b16 %v737
        %v823 = vunpack.c.l.b16 %v738
        %v824 = vunpack.c.h.b16 %v738
        %v825 = vunpack.c.l.b16 %v739
        %v826 = vunpack.c.h.b16 %v739
        %v827 = vunpack.c.l.b16 %v740
        %v828 = vunpack.c.h.b16 %v740
        %v829 = vunpack.c.l.b16 %v741
        %v830 = vunpack.c.h.b16 %v741
        %v831 = vunpack.c.l.b16 %v742
        %v832 = vunpack.c.h.b16 %v742
        %v833 = vunpack.c.l.b16 %v743
        %v834 = vunpack.c.h.b16 %v743
        %v835 = vunpack.c.l.b16 %v744
        %v836 = vunpack.c.h.b16 %v744
        %v837 = vunpack.c.l.b16 %v745
        %v838 = vunpack.c.h.b16 %v745
        %v839 = vunpack.c.l.b16 %v746
        %v840 = vunpack.c.h.b16 %v746
        %v841 = vunpack.c.l.b16 %v747
        %v842 = vunpack.c.h.b16 %v747
        %v843 = vunpack.c.l.b16 %v748
        %v844 = vunpack.c.h.b16 %v748
        %v845 = vunpack.c.l.b16 %v749
        %v846 = vunpack.c.h.b16 %v749
        %v847 = vunpack.c.l.b16 %v750
        %v848 = vunpack.c.h.b16 %v750
        %v849 = vunpack.c.l.b16 %v751
        %v850 = vunpack.c.h.b16 %v751
        %v851 = vunpack.c.l.b16 %v752
        %v852 = vunpack.c.h.b16 %v752
        %v853 = vunpack.c.l.b16 %v753
        %v854 = vunpack.c.h.b16 %v753
        %v855 = vunpack.c.l.b16 %v754
        %v856 = vunpack.c.h.b16 %v754
        %v857 = vunpack.c.l.b16 %v755
        %v858 = vunpack.c.h.b16 %v755
        %v859 = vunpack.c.l.b16 %v756
        %v860 = vunpack.c.h.b16 %v756
        %v861 = vunpack.c.l.b16 %v757
        %v862 = vunpack.c.h.b16 %v757
        %v863 = vunpack.c.l.b16 %v758
        %v864 = vunpack.c.h.b16 %v758
        %v865 = vunpack.c.l.b16 %v759
        %v866 = vunpack.c.h.b16 %v759
        %v867 = vunpack.c.l.b16 %v760
        %v868 = vunpack.c.h.b16 %v760
        %v869 = vpack.c.b16 %v807, %v805
        %v870 = vpack.c.b16 %v808, %v806
        %v871 = vpack.c.b16 %v811, %v809
        %v872 = vpack.c.b16 %v812, %v810
        %v873 = vpack.c.b16 %v815, %v813
        %v874 = vpack.c.b16 %v816, %v814
        %v875 = vpack.c.b16 %v819, %v817
        %v876 = vpack.c.b16 %v820, %v818
        %v877 = vpack.c.b16 %v823, %v821
        %v878 = vpack.c.b16 %v824, %v822
        %v879 = vpack.c.b16 %v827, %v825
        %v880 = vpack.c.b16 %v828, %v826
        %v881 = vpack.c.b16 %v831, %v829
        %v882 = vpack.c.b16 %v832, %v830
        %v883 = vpack.c.b16 %v835, %v833
        %v884 = vpack.c.b16 %v836, %v834
        %v885 = vpack.c.b16 %v839, %v837
        %v886 = vpack.c.b16 %v840, %v838
        %v887 = vpack.c.b16 %v843, %v841
        %v888 = vpack.c.b16 %v844, %v842
        %v889 = vpack.c.b16 %v847, %v845
        %v890 = vpack.c.b16 %v848, %v846
        %v891 = vpack.c.b16 %v851, %v849
        %v892 = vpack.c.b16 %v852, %v850
        %v893 = vpack.c.b16 %v855, %v853
        %v894 = vpack.c.b16 %v856, %v854
        %v895 = vpack.c.b16 %v859, %v857
        %v896 = vpack.c.b16 %v860, %v858
        %v897 = vpack.c.b16 %v863, %v861
        %v898 = vpack.c.b16 %v864, %v862
        %v899 = vpack.c.b16 %v867, %v865
        %v900 = vpack.c.b16 %v868, %v866
        %933 = vmatprep.subr.bf16.mxu0 %v870
        %934 = vmatpush1.bf16.msra.mxu0 %v869
        %935 = vmatprep.subr.bf16.mxu0 %v872
        %936 = vmatpush1.bf16.msra.mxu0 %v871
        %937 = vmatprep.subr.bf16.mxu0 %v874
        %938 = vmatpush1.bf16.msra.mxu0 %v873
        %939 = vmatprep.subr.bf16.mxu0 %v876
        %940 = vmatpush1.bf16.msra.mxu0 %v875
        %941 = vmatprep.subr.bf16.mxu0 %v878
        %942 = vmatpush1.bf16.msra.mxu0 %v877
        %943 = vmatprep.subr.bf16.mxu0 %v880
        %944 = vmatpush1.bf16.msra.mxu0 %v879
        %945 = vmatprep.subr.bf16.mxu0 %v882
        %946 = vmatpush1.bf16.msra.mxu0 %v881
        %947 = vmatprep.subr.bf16.mxu0 %v884
        %948 = vmatpush1.bf16.msra.mxu0 %v883
        %949 = vmatprep.subr.bf16.mxu0 %v886
        %950 = vmatpush1.bf16.msra.mxu0 %v885
        %951 = vmatprep.subr.bf16.mxu0 %v888
        %952 = vmatpush1.bf16.msra.mxu0 %v887
        %953 = vmatprep.subr.bf16.mxu0 %v890
        %954 = vmatpush1.bf16.msra.mxu0 %v889
        %955 = vmatprep.subr.bf16.mxu0 %v892
        %956 = vmatpush1.bf16.msra.mxu0 %v891
        %957 = vmatprep.subr.bf16.mxu0 %v894
        %958 = vmatpush1.bf16.msra.mxu0 %v893
        %959 = vmatprep.subr.bf16.mxu0 %v896
        %960 = vmatpush1.bf16.msra.mxu0 %v895
        %961 = vmatprep.subr.bf16.mxu0 %v898
        %962 = vmatpush1.bf16.msra.mxu0 %v897
        %963 = vmatprep.subr.bf16.mxu0 %v900
        %964 = vmatpush1.bf16.msra.mxu0 %v899
        %965 = vmatprep.mubr.bf16.mxu0 %v726
        %966 = vmatmul.mubr.bf16.gmra.mrb[0].mxu0 %v725
        %v967 = vpop.f32.mrb[0].mxu0
        %v968 = vadd.f32 %v766, %v967
        %v969 = vpop.f32.mrb[0].mxu0
        %v970 = vadd.f32 %v770, %v969
        %v971 = vpop.f32.mrb[0].mxu0
        %v972 = vadd.f32 %v766, %v971
        %v973 = vpop.f32.mrb[0].mxu0
        %v974 = vadd.f32 %v770, %v973
        %975 = vmatprep.mubr.bf16.mxu0 %v728
        %976 = vmatmul.mubr.bf16.gmra.mrb[0].mxu0 %v727
        %v977 = vpop.f32.mrb[0].mxu0
        %v978 = vadd.f32 %v766, %v977
        %v979 = vpop.f32.mrb[0].mxu0
        %v980 = vadd.f32 %v770, %v979
        %v981 = vpop.f32.mrb[0].mxu0
        %v982 = vadd.f32 %v766, %v981
        %v983 = vpop.f32.mrb[0].mxu0
        %v984 = vadd.f32 %v770, %v983
        %985 = vdwg.mxu0
        %v986 = vmax.f32 %v968, 0.0
        %v987 = vmax.f32 %v970, 0.0
        %v988 = vmax.f32 %v972, 0.0
        %v989 = vmax.f32 %v974, 0.0
        %v990 = vmax.f32 %v978, 0.0
        %v991 = vmax.f32 %v980, 0.0
        %v992 = vmax.f32 %v982, 0.0
        %v993 = vmax.f32 %v984, 0.0
        %v994 = vand.u32 2147483647, %v986
        %v995 = vand.u32 2147483647, %v987
        %v996 = vand.u32 2147483647, %v988
        %v997 = vand.u32 2147483647, %v989
        %v998 = vand.u32 2147483647, %v990
        %v999 = vand.u32 2147483647, %v991
        %v1000 = vand.u32 2147483647, %v992
        %v1001 = vand.u32 2147483647, %v993
        %v1002 = vadd.f32 %v994, %v995
        %1003 = vadd.xlane.f32.xlu0 %v1002
        %v1004 = vpop.xlane.xlu0 %1003
        %v1005 = vadd.f32 %v996, %v997
        %1006 = vadd.xlane.f32.xlu0 %v1005
        %v1007 = vpop.xlane.xlu0 %1006
        %v1008 = vadd.f32 %v998, %v999
        %1009 = vadd.xlane.f32.xlu0 %v1008
        %v1010 = vpop.xlane.xlu0 %1009
        %v1011 = vadd.f32 %v1000, %v1001
        %1012 = vadd.xlane.f32.xlu0 %v1011
        %v1013 = vpop.xlane.xlu0 %1012
        %v1014 = vrcp.pop 256.0
        %v1015 = vmul.f32 %v1004, %v1014
        %v1016 = vmul.f32 %v1007, %v1014
        %v1017 = vmul.f32 %v1010, %v1014
        %v1018 = vmul.f32 %v1013, %v1014
        %v1019 = vmax.f32 %v1015, 1e-08
        %v1020 = vmax.f32 %v1016, 1e-08
        %v1021 = vmax.f32 %v1017, 1e-08
        %v1022 = vmax.f32 %v1018, 1e-08
        %v1023 = vrcp.pop %v1019
        %v1024 = vrcp.pop %v1020
        %v1025 = vrcp.pop %v1021
        %v1026 = vrcp.pop %v1022
        %v1027 = vmul.f32 %v986, %v1023
        %v1028 = vmul.f32 %v987, %v1023
        %v1029 = vmul.f32 %v988, %v1024
        %v1030 = vmul.f32 %v989, %v1024
        %v1031 = vmul.f32 %v990, %v1025
        %v1032 = vmul.f32 %v991, %v1025
        %v1033 = vmul.f32 %v992, %v1026
        %v1034 = vmul.f32 %v993, %v1026
        %v1035 = vpack.c.bf16 %v1029, %v1027
        %v1036 = vpack.c.bf16 %v1030, %v1028
        %v1037 = vpack.c.bf16 %v1033, %v1031
        %v1038 = vpack.c.bf16 %v1034, %v1032
        %v1039 = vld [vmem:[#allocation8] sm:$0xff]
        %v1040 = vld [vmem:[#allocation8 + $0x8] sm:$0xff]
        %v1041 = vld [vmem:[#allocation8 + $0x10] sm:$0xff]
        %v1042 = vld [vmem:[#allocation8 + $0x18] sm:$0xff]
        %v1043 = vld [vmem:[#allocation8 + $0x20] sm:$0xff]
        %v1044 = vld [vmem:[#allocation8 + $0x28] sm:$0xff]
        %v1045 = vld [vmem:[#allocation8 + $0x30] sm:$0xff]
        %v1046 = vld [vmem:[#allocation8 + $0x38] sm:$0xff]
        %v1047 = vld [vmem:[#allocation8 + $0x40] sm:$0xff]
        %v1048 = vld [vmem:[#allocation8 + $0x48] sm:$0xff]
        %v1049 = vld [vmem:[#allocation8 + $0x50] sm:$0xff]
        %v1050 = vld [vmem:[#allocation8 + $0x58] sm:$0xff]
        %v1051 = vld [vmem:[#allocation8 + $0x60] sm:$0xff]
        %v1052 = vld [vmem:[#allocation8 + $0x68] sm:$0xff]
        %v1053 = vld [vmem:[#allocation8 + $0x70] sm:$0xff]
        %v1054 = vld [vmem:[#allocation8 + $0x78] sm:$0xff]
        %v1055 = vld [vmem:[#allocation8 + $0x80] sm:$0xff]
        %v1056 = vld [vmem:[#allocation8 + $0x88] sm:$0xff]
        %v1057 = vld [vmem:[#allocation8 + $0x90] sm:$0xff]
        %v1058 = vld [vmem:[#allocation8 + $0x98] sm:$0xff]
        %v1059 = vld [vmem:[#allocation8 + $0xa0] sm:$0xff]
        %v1060 = vld [vmem:[#allocation8 + $0xa8] sm:$0xff]
        %v1061 = vld [vmem:[#allocation8 + $0xb0] sm:$0xff]
        %v1062 = vld [vmem:[#allocation8 + $0xb8] sm:$0xff]
        %v1063 = vld [vmem:[#allocation8 + $0xc0] sm:$0xff]
        %v1064 = vld [vmem:[#allocation8 + $0xc8] sm:$0xff]
        %v1065 = vld [vmem:[#allocation8 + $0xd0] sm:$0xff]
        %v1066 = vld [vmem:[#allocation8 + $0xd8] sm:$0xff]
        %v1067 = vld [vmem:[#allocation8 + $0xe0] sm:$0xff]
        %v1068 = vld [vmem:[#allocation8 + $0xe8] sm:$0xff]
        %v1069 = vld [vmem:[#allocation8 + $0xf0] sm:$0xff]
        %v1070 = vld [vmem:[#allocation8 + $0xf8] sm:$0xff]
        %v1071 = vld [vmem:[%s625] sm:$0xff]
        %v1072 = vld [vmem:[%s625 + $0x8] sm:$0xff]
        %v1073 = vld [vmem:[%s625 + $0x10] sm:$0xff]
        %v1074 = vld [vmem:[%s625 + $0x18] sm:$0xff]
        %v1075 = vld [vmem:[%s625 + $0x20] sm:$0xff]
        %v1076 = vld [vmem:[%s625 + $0x28] sm:$0xff]
        %v1077 = vld [vmem:[%s625 + $0x30] sm:$0xff]
        %v1078 = vld [vmem:[%s625 + $0x38] sm:$0xff]
        %v1079 = vpack.c.bf16 %v1073, %v1071
        %v1080 = vpack.c.bf16 %v1074, %v1072
        %v1081 = vpack.c.bf16 %v1077, %v1075
        %v1082 = vpack.c.bf16 %v1078, %v1076
        %v1083 = vld [vmem:[#allocation10] sm:$0xff]
        %v1084 = vld [vmem:[#allocation10 + $0x8] sm:$0xff]
        %v1085 = vld [vmem:[#allocation10 + $0x10] sm:$0xff]
        %v1086 = vld [vmem:[#allocation10 + $0x18] sm:$0xff]
        %v1087 = vld [vmem:[#allocation10 + $0x20] sm:$0xff]
        %v1088 = vld [vmem:[#allocation10 + $0x28] sm:$0xff]
        %v1089 = vld [vmem:[#allocation10 + $0x30] sm:$0xff]
        %v1090 = vld [vmem:[#allocation10 + $0x38] sm:$0xff]
        %v1091 = vld [vmem:[#allocation10 + $0x40] sm:$0xff]
        %v1092 = vld [vmem:[#allocation10 + $0x48] sm:$0xff]
        %v1093 = vld [vmem:[#allocation10 + $0x50] sm:$0xff]
        %v1094 = vld [vmem:[#allocation10 + $0x58] sm:$0xff]
        %v1095 = vld [vmem:[#allocation10 + $0x60] sm:$0xff]
        %v1096 = vld [vmem:[#allocation10 + $0x68] sm:$0xff]
        %v1097 = vld [vmem:[#allocation10 + $0x70] sm:$0xff]
        %v1098 = vld [vmem:[#allocation10 + $0x78] sm:$0xff]
        %v1099 = vld [vmem:[#allocation10 + $0x80] sm:$0xff]
        %v1100 = vld [vmem:[#allocation10 + $0x88] sm:$0xff]
        %v1101 = vld [vmem:[#allocation10 + $0x90] sm:$0xff]
        %v1102 = vld [vmem:[#allocation10 + $0x98] sm:$0xff]
        %v1103 = vld [vmem:[#allocation10 + $0xa0] sm:$0xff]
        %v1104 = vld [vmem:[#allocation10 + $0xa8] sm:$0xff]
        %v1105 = vld [vmem:[#allocation10 + $0xb0] sm:$0xff]
        %v1106 = vld [vmem:[#allocation10 + $0xb8] sm:$0xff]
        %v1107 = vld [vmem:[#allocation10 + $0xc0] sm:$0xff]
        %v1108 = vld [vmem:[#allocation10 + $0xc8] sm:$0xff]
        %v1109 = vld [vmem:[#allocation10 + $0xd0] sm:$0xff]
        %v1110 = vld [vmem:[#allocation10 + $0xd8] sm:$0xff]
        %v1111 = vld [vmem:[#allocation10 + $0xe0] sm:$0xff]
        %v1112 = vld [vmem:[#allocation10 + $0xe8] sm:$0xff]
        %v1113 = vld [vmem:[#allocation10 + $0xf0] sm:$0xff]
        %v1114 = vld [vmem:[#allocation10 + $0xf8] sm:$0xff]
        %v1147 = vunpack.c.l.b16 %v1083
        %v1148 = vunpack.c.h.b16 %v1083
        %v1149 = vunpack.c.l.b16 %v1084
        %v1150 = vunpack.c.h.b16 %v1084
        %v1151 = vunpack.c.l.b16 %v1085
        %v1152 = vunpack.c.h.b16 %v1085
        %v1153 = vunpack.c.l.b16 %v1086
        %v1154 = vunpack.c.h.b16 %v1086
        %v1155 = vunpack.c.l.b16 %v1087
        %v1156 = vunpack.c.h.b16 %v1087
        %v1157 = vunpack.c.l.b16 %v1088
        %v1158 = vunpack.c.h.b16 %v1088
        %v1159 = vunpack.c.l.b16 %v1089
        %v1160 = vunpack.c.h.b16 %v1089
        %v1161 = vunpack.c.l.b16 %v1090
        %v1162 = vunpack.c.h.b16 %v1090
        %v1163 = vunpack.c.l.b16 %v1091
        %v1164 = vunpack.c.h.b16 %v1091
        %v1165 = vunpack.c.l.b16 %v1092
        %v1166 = vunpack.c.h.b16 %v1092
        %v1167 = vunpack.c.l.b16 %v1093
        %v1168 = vunpack.c.h.b16 %v1093
        %v1169 = vunpack.c.l.b16 %v1094
        %v1170 = vunpack.c.h.b16 %v1094
        %v1171 = vunpack.c.l.b16 %v1095
        %v1172 = vunpack.c.h.b16 %v1095
        %v1173 = vunpack.c.l.b16 %v1096
        %v1174 = vunpack.c.h.b16 %v1096
        %v1175 = vunpack.c.l.b16 %v1097
        %v1176 = vunpack.c.h.b16 %v1097
        %v1177 = vunpack.c.l.b16 %v1098
        %v1178 = vunpack.c.h.b16 %v1098
        %v1179 = vunpack.c.l.b16 %v1099
        %v1180 = vunpack.c.h.b16 %v1099
        %v1181 = vunpack.c.l.b16 %v1100
        %v1182 = vunpack.c.h.b16 %v1100
        %v1183 = vunpack.c.l.b16 %v1101
        %v1184 = vunpack.c.h.b16 %v1101
        %v1185 = vunpack.c.l.b16 %v1102
        %v1186 = vunpack.c.h.b16 %v1102
        %v1187 = vunpack.c.l.b16 %v1103
        %v1188 = vunpack.c.h.b16 %v1103
        %v1189 = vunpack.c.l.b16 %v1104
        %v1190 = vunpack.c.h.b16 %v1104
        %v1191 = vunpack.c.l.b16 %v1105
        %v1192 = vunpack.c.h.b16 %v1105
        %v1193 = vunpack.c.l.b16 %v1106
        %v1194 = vunpack.c.h.b16 %v1106
        %v1195 = vunpack.c.l.b16 %v1107
        %v1196 = vunpack.c.h.b16 %v1107
        %v1197 = vunpack.c.l.b16 %v1108
        %v1198 = vunpack.c.h.b16 %v1108
        %v1199 = vunpack.c.l.b16 %v1109
        %v1200 = vunpack.c.h.b16 %v1109
        %v1201 = vunpack.c.l.b16 %v1110
        %v1202 = vunpack.c.h.b16 %v1110
        %v1203 = vunpack.c.l.b16 %v1111
        %v1204 = vunpack.c.h.b16 %v1111
        %v1205 = vunpack.c.l.b16 %v1112
        %v1206 = vunpack.c.h.b16 %v1112
        %v1207 = vunpack.c.l.b16 %v1113
        %v1208 = vunpack.c.h.b16 %v1113
        %v1209 = vunpack.c.l.b16 %v1114
        %v1210 = vunpack.c.h.b16 %v1114
        %v1211 = vpack.c.b16 %v1149, %v1147
        %v1212 = vpack.c.b16 %v1150, %v1148
        %v1213 = vpack.c.b16 %v1153, %v1151
        %v1214 = vpack.c.b16 %v1154, %v1152
        %v1215 = vpack.c.b16 %v1157, %v1155
        %v1216 = vpack.c.b16 %v1158, %v1156
        %v1217 = vpack.c.b16 %v1161, %v1159
        %v1218 = vpack.c.b16 %v1162, %v1160
        %v1219 = vpack.c.b16 %v1165, %v1163
        %v1220 = vpack.c.b16 %v1166, %v1164
        %v1221 = vpack.c.b16 %v1169, %v1167
        %v1222 = vpack.c.b16 %v1170, %v1168
        %v1223 = vpack.c.b16 %v1173, %v1171
        %v1224 = vpack.c.b16 %v1174, %v1172
        %v1225 = vpack.c.b16 %v1177, %v1175
        %v1226 = vpack.c.b16 %v1178, %v1176
        %v1227 = vpack.c.b16 %v1181, %v1179
        %v1228 = vpack.c.b16 %v1182, %v1180
        %v1229 = vpack.c.b16 %v1185, %v1183
        %v1230 = vpack.c.b16 %v1186, %v1184
        %v1231 = vpack.c.b16 %v1189, %v1187
        %v1232 = vpack.c.b16 %v1190, %v1188
        %v1233 = vpack.c.b16 %v1193, %v1191
        %v1234 = vpack.c.b16 %v1194, %v1192
        %v1235 = vpack.c.b16 %v1197, %v1195
        %v1236 = vpack.c.b16 %v1198, %v1196
        %v1237 = vpack.c.b16 %v1201, %v1199
        %v1238 = vpack.c.b16 %v1202, %v1200
        %v1239 = vpack.c.b16 %v1205, %v1203
        %v1240 = vpack.c.b16 %v1206, %v1204
        %v1241 = vpack.c.b16 %v1209, %v1207
        %v1242 = vpack.c.b16 %v1210, %v1208
        %1275 = vmatprep.subr.bf16.mxu0 %v1212
        %1276 = vmatpush1.bf16.msra.mxu0 %v1211
        %1277 = vmatprep.subr.bf16.mxu0 %v1214
        %1278 = vmatpush1.bf16.msra.mxu0 %v1213
        %1279 = vmatprep.subr.bf16.mxu0 %v1216
        %1280 = vmatpush1.bf16.msra.mxu0 %v1215
        %1281 = vmatprep.subr.bf16.mxu0 %v1218
        %1282 = vmatpush1.bf16.msra.mxu0 %v1217
        %1283 = vmatprep.subr.bf16.mxu0 %v1220
        %1284 = vmatpush1.bf16.msra.mxu0 %v1219
        %1285 = vmatprep.subr.bf16.mxu0 %v1222
        %1286 = vmatpush1.bf16.msra.mxu0 %v1221
        %1287 = vmatprep.subr.bf16.mxu0 %v1224
        %1288 = vmatpush1.bf16.msra.mxu0 %v1223
        %1289 = vmatprep.subr.bf16.mxu0 %v1226
        %1290 = vmatpush1.bf16.msra.mxu0 %v1225
        %1291 = vmatprep.subr.bf16.mxu0 %v1228
        %1292 = vmatpush1.bf16.msra.mxu0 %v1227
        %1293 = vmatprep.subr.bf16.mxu0 %v1230
        %1294 = vmatpush1.bf16.msra.mxu0 %v1229
        %1295 = vmatprep.subr.bf16.mxu0 %v1232
        %1296 = vmatpush1.bf16.msra.mxu0 %v1231
        %1297 = vmatprep.subr.bf16.mxu0 %v1234
        %1298 = vmatpush1.bf16.msra.mxu0 %v1233
        %1299 = vmatprep.subr.bf16.mxu0 %v1236
        %1300 = vmatpush1.bf16.msra.mxu0 %v1235
        %1301 = vmatprep.subr.bf16.mxu0 %v1238
        %1302 = vmatpush1.bf16.msra.mxu0 %v1237
        %1303 = vmatprep.subr.bf16.mxu0 %v1240
        %1304 = vmatpush1.bf16.msra.mxu0 %v1239
        %1305 = vmatprep.subr.bf16.mxu0 %v1242
        %1306 = vmatpush1.bf16.msra.mxu0 %v1241
        %1307 = vmatprep.mubr.bf16.mxu0 %v1080
        %1308 = vmatmul.mubr.bf16.gmra.mrb[0].mxu0 %v1079
        %v1309 = vpop.f32.mrb[0].mxu0
        %v1310 = vadd.f32 0.0, %v1309
        %v1311 = vpop.f32.mrb[0].mxu0
        %v1312 = vadd.f32 0.0, %v1311
        %v1313 = vpop.f32.mrb[0].mxu0
        %v1314 = vadd.f32 0.0, %v1313
        %v1315 = vpop.f32.mrb[0].mxu0
        %v1316 = vadd.f32 0.0, %v1315
        %1317 = vmatprep.mubr.bf16.mxu0 %v1082
        %1318 = vmatmul.mubr.bf16.gmra.mrb[0].mxu0 %v1081
        %v1319 = vpop.f32.mrb[0].mxu0
        %v1320 = vadd.f32 0.0, %v1319
        %v1321 = vpop.f32.mrb[0].mxu0
        %v1322 = vadd.f32 0.0, %v1321
        %v1323 = vpop.f32.mrb[0].mxu0
        %v1324 = vadd.f32 0.0, %v1323
        %v1325 = vpop.f32.mrb[0].mxu0
        %v1326 = vadd.f32 0.0, %v1325
        %1327 = vdwg.mxu0
        %v1360 = vunpack.c.l.b16 %v1039
        %v1361 = vunpack.c.h.b16 %v1039
        %v1362 = vunpack.c.l.b16 %v1040
        %v1363 = vunpack.c.h.b16 %v1040
        %v1364 = vunpack.c.l.b16 %v1041
        %v1365 = vunpack.c.h.b16 %v1041
        %v1366 = vunpack.c.l.b16 %v1042
        %v1367 = vunpack.c.h.b16 %v1042
        %v1368 = vunpack.c.l.b16 %v1043
        %v1369 = vunpack.c.h.b16 %v1043
        %v1370 = vunpack.c.l.b16 %v1044
        %v1371 = vunpack.c.h.b16 %v1044
        %v1372 = vunpack.c.l.b16 %v1045
        %v1373 = vunpack.c.h.b16 %v1045
        %v1374 = vunpack.c.l.b16 %v1046
        %v1375 = vunpack.c.h.b16 %v1046
        %v1376 = vunpack.c.l.b16 %v1047
        %v1377 = vunpack.c.h.b16 %v1047
        %v1378 = vunpack.c.l.b16 %v1048
        %v1379 = vunpack.c.h.b16 %v1048
        %v1380 = vunpack.c.l.b16 %v1049
        %v1381 = vunpack.c.h.b16 %v1049
        %v1382 = vunpack.c.l.b16 %v1050
        %v1383 = vunpack.c.h.b16 %v1050
        %v1384 = vunpack.c.l.b16 %v1051
        %v1385 = vunpack.c.h.b16 %v1051
        %v1386 = vunpack.c.l.b16 %v1052
        %v1387 = vunpack.c.h.b16 %v1052
        %v1388 = vunpack.c.l.b16 %v1053
        %v1389 = vunpack.c.h.b16 %v1053
        %v1390 = vunpack.c.l.b16 %v1054
        %v1391 = vunpack.c.h.b16 %v1054
        %v1392 = vunpack.c.l.b16 %v1055
        %v1393 = vunpack.c.h.b16 %v1055
        %v1394 = vunpack.c.l.b16 %v1056
        %v1395 = vunpack.c.h.b16 %v1056
        %v1396 = vunpack.c.l.b16 %v1057
        %v1397 = vunpack.c.h.b16 %v1057
        %v1398 = vunpack.c.l.b16 %v1058
        %v1399 = vunpack.c.h.b16 %v1058
        %v1400 = vunpack.c.l.b16 %v1059
        %v1401 = vunpack.c.h.b16 %v1059
        %v1402 = vunpack.c.l.b16 %v1060
        %v1403 = vunpack.c.h.b16 %v1060
        %v1404 = vunpack.c.l.b16 %v1061
        %v1405 = vunpack.c.h.b16 %v1061
        %v1406 = vunpack.c.l.b16 %v1062
        %v1407 = vunpack.c.h.b16 %v1062
        %v1408 = vunpack.c.l.b16 %v1063
        %v1409 = vunpack.c.h.b16 %v1063
        %v1410 = vunpack.c.l.b16 %v1064
        %v1411 = vunpack.c.h.b16 %v1064
        %v1412 = vunpack.c.l.b16 %v1065
        %v1413 = vunpack.c.h.b16 %v1065
        %v1414 = vunpack.c.l.b16 %v1066
        %v1415 = vunpack.c.h.b16 %v1066
        %v1416 = vunpack.c.l.b16 %v1067
        %v1417 = vunpack.c.h.b16 %v1067
        %v1418 = vunpack.c.l.b16 %v1068
        %v1419 = vunpack.c.h.b16 %v1068
        %v1420 = vunpack.c.l.b16 %v1069
        %v1421 = vunpack.c.h.b16 %v1069
        %v1422 = vunpack.c.l.b16 %v1070
        %v1423 = vunpack.c.h.b16 %v1070
        %v1424 = vpack.c.b16 %v1362, %v1360
        %v1425 = vpack.c.b16 %v1363, %v1361
        %v1426 = vpack.c.b16 %v1366, %v1364
        %v1427 = vpack.c.b16 %v1367, %v1365
        %v1428 = vpack.c.b16 %v1370, %v1368
        %v1429 = vpack.c.b16 %v1371, %v1369
        %v1430 = vpack.c.b16 %v1374, %v1372
        %v1431 = vpack.c.b16 %v1375, %v1373
        %v1432 = vpack.c.b16 %v1378, %v1376
        %v1433 = vpack.c.b16 %v1379, %v1377
        %v1434 = vpack.c.b16 %v1382, %v1380
        %v1435 = vpack.c.b16 %v1383, %v1381
        %v1436 = vpack.c.b16 %v1386, %v1384
        %v1437 = vpack.c.b16 %v1387, %v1385
        %v1438 = vpack.c.b16 %v1390, %v1388
        %v1439 = vpack.c.b16 %v1391, %v1389
        %v1440 = vpack.c.b16 %v1394, %v1392
        %v1441 = vpack.c.b16 %v1395, %v1393
        %v1442 = vpack.c.b16 %v1398, %v1396
        %v1443 = vpack.c.b16 %v1399, %v1397
        %v1444 = vpack.c.b16 %v1402, %v1400
        %v1445 = vpack.c.b16 %v1403, %v1401
        %v1446 = vpack.c.b16 %v1406, %v1404
        %v1447 = vpack.c.b16 %v1407, %v1405
        %v1448 = vpack.c.b16 %v1410, %v1408
        %v1449 = vpack.c.b16 %v1411, %v1409
        %v1450 = vpack.c.b16 %v1414, %v1412
        %v1451 = vpack.c.b16 %v1415, %v1413
        %v1452 = vpack.c.b16 %v1418, %v1416
        %v1453 = vpack.c.b16 %v1419, %v1417
        %v1454 = vpack.c.b16 %v1422, %v1420
        %v1455 = vpack.c.b16 %v1423, %v1421
        %1488 = vmatprep.subr.bf16.mxu0 %v1425
        %1489 = vmatpush1.bf16.msra.mxu0 %v1424
        %1490 = vmatprep.subr.bf16.mxu0 %v1427
        %1491 = vmatpush1.bf16.msra.mxu0 %v1426
        %1492 = vmatprep.subr.bf16.mxu0 %v1429
        %1493 = vmatpush1.bf16.msra.mxu0 %v1428
        %1494 = vmatprep.subr.bf16.mxu0 %v1431
        %1495 = vmatpush1.bf16.msra.mxu0 %v1430
        %1496 = vmatprep.subr.bf16.mxu0 %v1433
        %1497 = vmatpush1.bf16.msra.mxu0 %v1432
        %1498 = vmatprep.subr.bf16.mxu0 %v1435
        %1499 = vmatpush1.bf16.msra.mxu0 %v1434
        %1500 = vmatprep.subr.bf16.mxu0 %v1437
        %1501 = vmatpush1.bf16.msra.mxu0 %v1436
        %1502 = vmatprep.subr.bf16.mxu0 %v1439
        %1503 = vmatpush1.bf16.msra.mxu0 %v1438
        %1504 = vmatprep.subr.bf16.mxu0 %v1441
        %1505 = vmatpush1.bf16.msra.mxu0 %v1440
        %1506 = vmatprep.subr.bf16.mxu0 %v1443
        %1507 = vmatpush1.bf16.msra.mxu0 %v1442
        %1508 = vmatprep.subr.bf16.mxu0 %v1445
        %1509 = vmatpush1.bf16.msra.mxu0 %v1444
        %1510 = vmatprep.subr.bf16.mxu0 %v1447
        %1511 = vmatpush1.bf16.msra.mxu0 %v1446
        %1512 = vmatprep.subr.bf16.mxu0 %v1449
        %1513 = vmatpush1.bf16.msra.mxu0 %v1448
        %1514 = vmatprep.subr.bf16.mxu0 %v1451
        %1515 = vmatpush1.bf16.msra.mxu0 %v1450
        %1516 = vmatprep.subr.bf16.mxu0 %v1453
        %1517 = vmatpush1.bf16.msra.mxu0 %v1452
        %1518 = vmatprep.subr.bf16.mxu0 %v1455
        %1519 = vmatpush1.bf16.msra.mxu0 %v1454
        %1520 = vmatprep.mubr.bf16.mxu0 %v1036
        %1521 = vmatmul.mubr.bf16.gmra.mrb[0].mxu0 %v1035
        %v1522 = vpop.f32.mrb[0].mxu0
        %v1523 = vadd.f32 %v1310, %v1522
        %v1524 = vpop.f32.mrb[0].mxu0
        %v1525 = vadd.f32 %v1312, %v1524
        %v1526 = vpop.f32.mrb[0].mxu0
        %v1527 = vadd.f32 %v1314, %v1526
        %v1528 = vpop.f32.mrb[0].mxu0
        %v1529 = vadd.f32 %v1316, %v1528
        %1530 = vmatprep.mubr.bf16.mxu0 %v1038
        %1531 = vmatmul.mubr.bf16.gmra.mrb[0].mxu0 %v1037
        %v1532 = vpop.f32.mrb[0].mxu0
        %v1533 = vadd.f32 %v1320, %v1532
        %v1534 = vpop.f32.mrb[0].mxu0
        %v1535 = vadd.f32 %v1322, %v1534
        %v1536 = vpop.f32.mrb[0].mxu0
        %v1537 = vadd.f32 %v1324, %v1536
        %v1538 = vpop.f32.mrb[0].mxu0
        %v1539 = vadd.f32 %v1326, %v1538
        %1540 = vdwg.mxu0
        %v1541 = vld [vmem:[%s6] sm:$0x3]
        %v1543 = vlaneseq
        %v1544 = vshrl.u32 %v1543, 7
        %v1545 = vsub.s32 0, %v1544
        %v1546 = vrot.slane %v1541, %v1545
        %v1547 = vlaneseq
        %v1548 = vshrl.u32 %v1547, 7
        %v1549 = vsub.s32 1, %v1548
        %v1550 = vrot.slane %v1541, %v1549
        %v1553 = vadd.f32 %v1523, %v1546
        %v1554 = vadd.f32 %v1525, %v1550
        %v1555 = vadd.f32 %v1527, %v1546
        %v1556 = vadd.f32 %v1529, %v1550
        %v1557 = vadd.f32 %v1533, %v1546
        %v1558 = vadd.f32 %v1535, %v1550
        %v1559 = vadd.f32 %v1537, %v1546
        %v1560 = vadd.f32 %v1539, %v1550
        %v1561 = vmax.f32 %v1553, 0.0
        %v1562 = vmax.f32 %v1554, 0.0
        %v1563 = vmax.f32 %v1555, 0.0
        %v1564 = vmax.f32 %v1556, 0.0
        %v1565 = vmax.f32 %v1557, 0.0
        %v1566 = vmax.f32 %v1558, 0.0
        %v1567 = vmax.f32 %v1559, 0.0
        %v1568 = vmax.f32 %v1560, 0.0
        %v1569 = vpack.c.bf16 %v1563, %v1561
        %v1570 = vpack.c.bf16 %v1564, %v1562
        %v1571 = vpack.c.bf16 %v1567, %v1565
        %v1572 = vpack.c.bf16 %v1568, %v1566
        %v1573 = vld [vmem:[#allocation11] sm:$0xff]
        %v1574 = vld [vmem:[#allocation11 + $0x8] sm:$0xff]
        %v1575 = vld [vmem:[#allocation11 + $0x10] sm:$0xff]
        %v1576 = vld [vmem:[#allocation11 + $0x18] sm:$0xff]
        %v1577 = vld [vmem:[#allocation11 + $0x20] sm:$0xff]
        %v1578 = vld [vmem:[#allocation11 + $0x28] sm:$0xff]
        %v1579 = vld [vmem:[#allocation11 + $0x30] sm:$0xff]
        %v1580 = vld [vmem:[#allocation11 + $0x38] sm:$0xff]
        %v1581 = vld [vmem:[#allocation11 + $0x40] sm:$0xff]
        %v1582 = vld [vmem:[#allocation11 + $0x48] sm:$0xff]
        %v1583 = vld [vmem:[#allocation11 + $0x50] sm:$0xff]
        %v1584 = vld [vmem:[#allocation11 + $0x58] sm:$0xff]
        %v1585 = vld [vmem:[#allocation11 + $0x60] sm:$0xff]
        %v1586 = vld [vmem:[#allocation11 + $0x68] sm:$0xff]
        %v1587 = vld [vmem:[#allocation11 + $0x70] sm:$0xff]
        %v1588 = vld [vmem:[#allocation11 + $0x78] sm:$0xff]
        %v1589 = vld [vmem:[#allocation11 + $0x80] sm:$0xff]
        %v1590 = vld [vmem:[#allocation11 + $0x88] sm:$0xff]
        %v1591 = vld [vmem:[#allocation11 + $0x90] sm:$0xff]
        %v1592 = vld [vmem:[#allocation11 + $0x98] sm:$0xff]
        %v1593 = vld [vmem:[#allocation11 + $0xa0] sm:$0xff]
        %v1594 = vld [vmem:[#allocation11 + $0xa8] sm:$0xff]
        %v1595 = vld [vmem:[#allocation11 + $0xb0] sm:$0xff]
        %v1596 = vld [vmem:[#allocation11 + $0xb8] sm:$0xff]
        %v1597 = vld [vmem:[#allocation11 + $0xc0] sm:$0xff]
        %v1598 = vld [vmem:[#allocation11 + $0xc8] sm:$0xff]
        %v1599 = vld [vmem:[#allocation11 + $0xd0] sm:$0xff]
        %v1600 = vld [vmem:[#allocation11 + $0xd8] sm:$0xff]
        %v1601 = vld [vmem:[#allocation11 + $0xe0] sm:$0xff]
        %v1602 = vld [vmem:[#allocation11 + $0xe8] sm:$0xff]
        %v1603 = vld [vmem:[#allocation11 + $0xf0] sm:$0xff]
        %v1604 = vld [vmem:[#allocation11 + $0xf8] sm:$0xff]
        %v1605 = vld [vmem:[%s8] sm:$0x3]
        %v1607 = vlaneseq
        %v1608 = vshrl.u32 %v1607, 7
        %v1609 = vsub.s32 0, %v1608
        %v1610 = vrot.slane %v1605, %v1609
        %v1611 = vlaneseq
        %v1612 = vshrl.u32 %v1611, 7
        %v1613 = vsub.s32 1, %v1612
        %v1614 = vrot.slane %v1605, %v1613
        %v1649 = vunpack.c.l.b16 %v1573
        %v1650 = vunpack.c.h.b16 %v1573
        %v1651 = vunpack.c.l.b16 %v1574
        %v1652 = vunpack.c.h.b16 %v1574
        %v1653 = vunpack.c.l.b16 %v1575
        %v1654 = vunpack.c.h.b16 %v1575
        %v1655 = vunpack.c.l.b16 %v1576
        %v1656 = vunpack.c.h.b16 %v1576
        %v1657 = vunpack.c.l.b16 %v1577
        %v1658 = vunpack.c.h.b16 %v1577
        %v1659 = vunpack.c.l.b16 %v1578
        %v1660 = vunpack.c.h.b16 %v1578
        %v1661 = vunpack.c.l.b16 %v1579
        %v1662 = vunpack.c.h.b16 %v1579
        %v1663 = vunpack.c.l.b16 %v1580
        %v1664 = vunpack.c.h.b16 %v1580
        %v1665 = vunpack.c.l.b16 %v1581
        %v1666 = vunpack.c.h.b16 %v1581
        %v1667 = vunpack.c.l.b16 %v1582
        %v1668 = vunpack.c.h.b16 %v1582
        %v1669 = vunpack.c.l.b16 %v1583
        %v1670 = vunpack.c.h.b16 %v1583
        %v1671 = vunpack.c.l.b16 %v1584
        %v1672 = vunpack.c.h.b16 %v1584
        %v1673 = vunpack.c.l.b16 %v1585
        %v1674 = vunpack.c.h.b16 %v1585
        %v1675 = vunpack.c.l.b16 %v1586
        %v1676 = vunpack.c.h.b16 %v1586
        %v1677 = vunpack.c.l.b16 %v1587
        %v1678 = vunpack.c.h.b16 %v1587
        %v1679 = vunpack.c.l.b16 %v1588
        %v1680 = vunpack.c.h.b16 %v1588
        %v1681 = vunpack.c.l.b16 %v1589
        %v1682 = vunpack.c.h.b16 %v1589
        %v1683 = vunpack.c.l.b16 %v1590
        %v1684 = vunpack.c.h.b16 %v1590
        %v1685 = vunpack.c.l.b16 %v1591
        %v1686 = vunpack.c.h.b16 %v1591
        %v1687 = vunpack.c.l.b16 %v1592
        %v1688 = vunpack.c.h.b16 %v1592
        %v1689 = vunpack.c.l.b16 %v1593
        %v1690 = vunpack.c.h.b16 %v1593
        %v1691 = vunpack.c.l.b16 %v1594
        %v1692 = vunpack.c.h.b16 %v1594
        %v1693 = vunpack.c.l.b16 %v1595
        %v1694 = vunpack.c.h.b16 %v1595
        %v1695 = vunpack.c.l.b16 %v1596
        %v1696 = vunpack.c.h.b16 %v1596
        %v1697 = vunpack.c.l.b16 %v1597
        %v1698 = vunpack.c.h.b16 %v1597
        %v1699 = vunpack.c.l.b16 %v1598
        %v1700 = vunpack.c.h.b16 %v1598
        %v1701 = vunpack.c.l.b16 %v1599
        %v1702 = vunpack.c.h.b16 %v1599
        %v1703 = vunpack.c.l.b16 %v1600
        %v1704 = vunpack.c.h.b16 %v1600
        %v1705 = vunpack.c.l.b16 %v1601
        %v1706 = vunpack.c.h.b16 %v1601
        %v1707 = vunpack.c.l.b16 %v1602
        %v1708 = vunpack.c.h.b16 %v1602
        %v1709 = vunpack.c.l.b16 %v1603
        %v1710 = vunpack.c.h.b16 %v1603
        %v1711 = vunpack.c.l.b16 %v1604
        %v1712 = vunpack.c.h.b16 %v1604
        %v1713 = vpack.c.b16 %v1651, %v1649
        %v1714 = vpack.c.b16 %v1652, %v1650
        %v1715 = vpack.c.b16 %v1655, %v1653
        %v1716 = vpack.c.b16 %v1656, %v1654
        %v1717 = vpack.c.b16 %v1659, %v1657
        %v1718 = vpack.c.b16 %v1660, %v1658
        %v1719 = vpack.c.b16 %v1663, %v1661
        %v1720 = vpack.c.b16 %v1664, %v1662
        %v1721 = vpack.c.b16 %v1667, %v1665
        %v1722 = vpack.c.b16 %v1668, %v1666
        %v1723 = vpack.c.b16 %v1671, %v1669
        %v1724 = vpack.c.b16 %v1672, %v1670
        %v1725 = vpack.c.b16 %v1675, %v1673
        %v1726 = vpack.c.b16 %v1676, %v1674
        %v1727 = vpack.c.b16 %v1679, %v1677
        %v1728 = vpack.c.b16 %v1680, %v1678
        %v1729 = vpack.c.b16 %v1683, %v1681
        %v1730 = vpack.c.b16 %v1684, %v1682
        %v1731 = vpack.c.b16 %v1687, %v1685
        %v1732 = vpack.c.b16 %v1688, %v1686
        %v1733 = vpack.c.b16 %v1691, %v1689
        %v1734 = vpack.c.b16 %v1692, %v1690
        %v1735 = vpack.c.b16 %v1695, %v1693
        %v1736 = vpack.c.b16 %v1696, %v1694
        %v1737 = vpack.c.b16 %v1699, %v1697
        %v1738 = vpack.c.b16 %v1700, %v1698
        %v1739 = vpack.c.b16 %v1703, %v1701
        %v1740 = vpack.c.b16 %v1704, %v1702
        %v1741 = vpack.c.b16 %v1707, %v1705
        %v1742 = vpack.c.b16 %v1708, %v1706
        %v1743 = vpack.c.b16 %v1711, %v1709
        %v1744 = vpack.c.b16 %v1712, %v1710
        %1777 = vmatprep.subr.bf16.mxu0 %v1714
        %1778 = vmatpush1.bf16.msra.mxu0 %v1713
        %1779 = vmatprep.subr.bf16.mxu0 %v1716
        %1780 = vmatpush1.bf16.msra.mxu0 %v1715
        %1781 = vmatprep.subr.bf16.mxu0 %v1718
        %1782 = vmatpush1.bf16.msra.mxu0 %v1717
        %1783 = vmatprep.subr.bf16.mxu0 %v1720
        %1784 = vmatpush1.bf16.msra.mxu0 %v1719
        %1785 = vmatprep.subr.bf16.mxu0 %v1722
        %1786 = vmatpush1.bf16.msra.mxu0 %v1721
        %1787 = vmatprep.subr.bf16.mxu0 %v1724
        %1788 = vmatpush1.bf16.msra.mxu0 %v1723
        %1789 = vmatprep.subr.bf16.mxu0 %v1726
        %1790 = vmatpush1.bf16.msra.mxu0 %v1725
        %1791 = vmatprep.subr.bf16.mxu0 %v1728
        %1792 = vmatpush1.bf16.msra.mxu0 %v1727
        %1793 = vmatprep.subr.bf16.mxu0 %v1730
        %1794 = vmatpush1.bf16.msra.mxu0 %v1729
        %1795 = vmatprep.subr.bf16.mxu0 %v1732
        %1796 = vmatpush1.bf16.msra.mxu0 %v1731
        %1797 = vmatprep.subr.bf16.mxu0 %v1734
        %1798 = vmatpush1.bf16.msra.mxu0 %v1733
        %1799 = vmatprep.subr.bf16.mxu0 %v1736
        %1800 = vmatpush1.bf16.msra.mxu0 %v1735
        %1801 = vmatprep.subr.bf16.mxu0 %v1738
        %1802 = vmatpush1.bf16.msra.mxu0 %v1737
        %1803 = vmatprep.subr.bf16.mxu0 %v1740
        %1804 = vmatpush1.bf16.msra.mxu0 %v1739
        %1805 = vmatprep.subr.bf16.mxu0 %v1742
        %1806 = vmatpush1.bf16.msra.mxu0 %v1741
        %1807 = vmatprep.subr.bf16.mxu0 %v1744
        %1808 = vmatpush1.bf16.msra.mxu0 %v1743
        %1809 = vmatprep.mubr.bf16.mxu0 %v1570
        %1810 = vmatmul.mubr.bf16.gmra.mrb[0].mxu0 %v1569
        %v1811 = vpop.f32.mrb[0].mxu0
        %v1812 = vadd.f32 %v1610, %v1811
        %v1813 = vpop.f32.mrb[0].mxu0
        %v1814 = vadd.f32 %v1614, %v1813
        %v1815 = vpop.f32.mrb[0].mxu0
        %v1816 = vadd.f32 %v1610, %v1815
        %v1817 = vpop.f32.mrb[0].mxu0
        %v1818 = vadd.f32 %v1614, %v1817
        %1819 = vmatprep.mubr.bf16.mxu0 %v1572
        %1820 = vmatmul.mubr.bf16.gmra.mrb[0].mxu0 %v1571
        %v1821 = vpop.f32.mrb[0].mxu0
        %v1822 = vadd.f32 %v1610, %v1821
        %v1823 = vpop.f32.mrb[0].mxu0
        %v1824 = vadd.f32 %v1614, %v1823
        %v1825 = vpop.f32.mrb[0].mxu0
        %v1826 = vadd.f32 %v1610, %v1825
        %v1827 = vpop.f32.mrb[0].mxu0
        %v1828 = vadd.f32 %v1614, %v1827
        %1829 = vdwg.mxu0
        %vm1830 = vcmp.ge.f32.partialorder %v1812, 0.0
        %vm1831 = vcmp.ge.f32.partialorder %v1814, 0.0
        %vm1832 = vcmp.ge.f32.partialorder %v1816, 0.0
        %vm1833 = vcmp.ge.f32.partialorder %v1818, 0.0
        %vm1834 = vcmp.ge.f32.partialorder %v1822, 0.0
        %vm1835 = vcmp.ge.f32.partialorder %v1824, 0.0
        %vm1836 = vcmp.ge.f32.partialorder %v1826, 0.0
        %vm1837 = vcmp.ge.f32.partialorder %v1828, 0.0
        %v1838 = vmul.f32 %v1812, 0.01
        %v1839 = vmul.f32 %v1814, 0.01
        %v1840 = vmul.f32 %v1816, 0.01
        %v1841 = vmul.f32 %v1818, 0.01
        %v1842 = vmul.f32 %v1822, 0.01
        %v1843 = vmul.f32 %v1824, 0.01
        %v1844 = vmul.f32 %v1826, 0.01
        %v1845 = vmul.f32 %v1828, 0.01
        %v1846 = vsel %vm1830, %v1812, %v1838
        %v1847 = vsel %vm1831, %v1814, %v1839
        %v1848 = vsel %vm1832, %v1816, %v1840
        %v1849 = vsel %vm1833, %v1818, %v1841
        %v1850 = vsel %vm1834, %v1822, %v1842
        %v1851 = vsel %vm1835, %v1824, %v1843
        %v1852 = vsel %vm1836, %v1826, %v1844
        %v1853 = vsel %vm1837, %v1828, %v1845
        %v1854 = vpack.c.bf16 %v1848, %v1846
        %v1855 = vpack.c.bf16 %v1849, %v1847
        %v1856 = vpack.c.bf16 %v1852, %v1850
        %v1857 = vpack.c.bf16 %v1853, %v1851
        %v1858 = vld [vmem:[#allocation13] sm:$0xff]
        %v1859 = vld [vmem:[#allocation13 + $0x8] sm:$0xff]
        %v1860 = vld [vmem:[#allocation13 + $0x10] sm:$0xff]
        %v1861 = vld [vmem:[#allocation13 + $0x18] sm:$0xff]
        %v1862 = vld [vmem:[#allocation13 + $0x20] sm:$0xff]
        %v1863 = vld [vmem:[#allocation13 + $0x28] sm:$0xff]
        %v1864 = vld [vmem:[#allocation13 + $0x30] sm:$0xff]
        %v1865 = vld [vmem:[#allocation13 + $0x38] sm:$0xff]
        %v1866 = vld [vmem:[#allocation13 + $0x40] sm:$0xff]
        %v1867 = vld [vmem:[#allocation13 + $0x48] sm:$0xff]
        %v1868 = vld [vmem:[#allocation13 + $0x50] sm:$0xff]
        %v1869 = vld [vmem:[#allocation13 + $0x58] sm:$0xff]
        %v1870 = vld [vmem:[#allocation13 + $0x60] sm:$0xff]
        %v1871 = vld [vmem:[#allocation13 + $0x68] sm:$0xff]
        %v1872 = vld [vmem:[#allocation13 + $0x70] sm:$0xff]
        %v1873 = vld [vmem:[#allocation13 + $0x78] sm:$0xff]
        %v1874 = vld [vmem:[#allocation13 + $0x80] sm:$0xff]
        %v1875 = vld [vmem:[#allocation13 + $0x88] sm:$0xff]
        %v1876 = vld [vmem:[#allocation13 + $0x90] sm:$0xff]
        %v1877 = vld [vmem:[#allocation13 + $0x98] sm:$0xff]
        %v1878 = vld [vmem:[#allocation13 + $0xa0] sm:$0xff]
        %v1879 = vld [vmem:[#allocation13 + $0xa8] sm:$0xff]
        %v1880 = vld [vmem:[#allocation13 + $0xb0] sm:$0xff]
        %v1881 = vld [vmem:[#allocation13 + $0xb8] sm:$0xff]
        %v1882 = vld [vmem:[#allocation13 + $0xc0] sm:$0xff]
        %v1883 = vld [vmem:[#allocation13 + $0xc8] sm:$0xff]
        %v1884 = vld [vmem:[#allocation13 + $0xd0] sm:$0xff]
        %v1885 = vld [vmem:[#allocation13 + $0xd8] sm:$0xff]
        %v1886 = vld [vmem:[#allocation13 + $0xe0] sm:$0xff]
        %v1887 = vld [vmem:[#allocation13 + $0xe8] sm:$0xff]
        %v1888 = vld [vmem:[#allocation13 + $0xf0] sm:$0xff]
        %v1889 = vld [vmem:[#allocation13 + $0xf8] sm:$0xff]
        %v1890 = vld [vmem:[%s10] sm:$0x3]
        %v1892 = vlaneseq
        %v1893 = vshrl.u32 %v1892, 7
        %v1894 = vsub.s32 0, %v1893
        %v1895 = vrot.slane %v1890, %v1894
        %v1896 = vlaneseq
        %v1897 = vshrl.u32 %v1896, 7
        %v1898 = vsub.s32 1, %v1897
        %v1899 = vrot.slane %v1890, %v1898
        %v1934 = vunpack.c.l.b16 %v1858
        %v1935 = vunpack.c.h.b16 %v1858
        %v1936 = vunpack.c.l.b16 %v1859
        %v1937 = vunpack.c.h.b16 %v1859
        %v1938 = vunpack.c.l.b16 %v1860
        %v1939 = vunpack.c.h.b16 %v1860
        %v1940 = vunpack.c.l.b16 %v1861
        %v1941 = vunpack.c.h.b16 %v1861
        %v1942 = vunpack.c.l.b16 %v1862
        %v1943 = vunpack.c.h.b16 %v1862
        %v1944 = vunpack.c.l.b16 %v1863
        %v1945 = vunpack.c.h.b16 %v1863
        %v1946 = vunpack.c.l.b16 %v1864
        %v1947 = vunpack.c.h.b16 %v1864
        %v1948 = vunpack.c.l.b16 %v1865
        %v1949 = vunpack.c.h.b16 %v1865
        %v1950 = vunpack.c.l.b16 %v1866
        %v1951 = vunpack.c.h.b16 %v1866
        %v1952 = vunpack.c.l.b16 %v1867
        %v1953 = vunpack.c.h.b16 %v1867
        %v1954 = vunpack.c.l.b16 %v1868
        %v1955 = vunpack.c.h.b16 %v1868
        %v1956 = vunpack.c.l.b16 %v1869
        %v1957 = vunpack.c.h.b16 %v1869
        %v1958 = vunpack.c.l.b16 %v1870
        %v1959 = vunpack.c.h.b16 %v1870
        %v1960 = vunpack.c.l.b16 %v1871
        %v1961 = vunpack.c.h.b16 %v1871
        %v1962 = vunpack.c.l.b16 %v1872
        %v1963 = vunpack.c.h.b16 %v1872
        %v1964 = vunpack.c.l.b16 %v1873
        %v1965 = vunpack.c.h.b16 %v1873
        %v1966 = vunpack.c.l.b16 %v1874
        %v1967 = vunpack.c.h.b16 %v1874
        %v1968 = vunpack.c.l.b16 %v1875
        %v1969 = vunpack.c.h.b16 %v1875
        %v1970 = vunpack.c.l.b16 %v1876
        %v1971 = vunpack.c.h.b16 %v1876
        %v1972 = vunpack.c.l.b16 %v1877
        %v1973 = vunpack.c.h.b16 %v1877
        %v1974 = vunpack.c.l.b16 %v1878
        %v1975 = vunpack.c.h.b16 %v1878
        %v1976 = vunpack.c.l.b16 %v1879
        %v1977 = vunpack.c.h.b16 %v1879
        %v1978 = vunpack.c.l.b16 %v1880
        %v1979 = vunpack.c.h.b16 %v1880
        %v1980 = vunpack.c.l.b16 %v1881
        %v1981 = vunpack.c.h.b16 %v1881
        %v1982 = vunpack.c.l.b16 %v1882
        %v1983 = vunpack.c.h.b16 %v1882
        %v1984 = vunpack.c.l.b16 %v1883
        %v1985 = vunpack.c.h.b16 %v1883
        %v1986 = vunpack.c.l.b16 %v1884
        %v1987 = vunpack.c.h.b16 %v1884
        %v1988 = vunpack.c.l.b16 %v1885
        %v1989 = vunpack.c.h.b16 %v1885
        %v1990 = vunpack.c.l.b16 %v1886
        %v1991 = vunpack.c.h.b16 %v1886
        %v1992 = vunpack.c.l.b16 %v1887
        %v1993 = vunpack.c.h.b16 %v1887
        %v1994 = vunpack.c.l.b16 %v1888
        %v1995 = vunpack.c.h.b16 %v1888
        %v1996 = vunpack.c.l.b16 %v1889
        %v1997 = vunpack.c.h.b16 %v1889
        %v1998 = vpack.c.b16 %v1936, %v1934
        %v1999 = vpack.c.b16 %v1937, %v1935
        %v2000 = vpack.c.b16 %v1940, %v1938
        %v2001 = vpack.c.b16 %v1941, %v1939
        %v2002 = vpack.c.b16 %v1944, %v1942
        %v2003 = vpack.c.b16 %v1945, %v1943
        %v2004 = vpack.c.b16 %v1948, %v1946
        %v2005 = vpack.c.b16 %v1949, %v1947
        %v2006 = vpack.c.b16 %v1952, %v1950
        %v2007 = vpack.c.b16 %v1953, %v1951
        %v2008 = vpack.c.b16 %v1956, %v1954
        %v2009 = vpack.c.b16 %v1957, %v1955
        %v2010 = vpack.c.b16 %v1960, %v1958
        %v2011 = vpack.c.b16 %v1961, %v1959
        %v2012 = vpack.c.b16 %v1964, %v1962
        %v2013 = vpack.c.b16 %v1965, %v1963
        %v2014 = vpack.c.b16 %v1968, %v1966
        %v2015 = vpack.c.b16 %v1969, %v1967
        %v2016 = vpack.c.b16 %v1972, %v1970
        %v2017 = vpack.c.b16 %v1973, %v1971
        %v2018 = vpack.c.b16 %v1976, %v1974
        %v2019 = vpack.c.b16 %v1977, %v1975
        %v2020 = vpack.c.b16 %v1980, %v1978
        %v2021 = vpack.c.b16 %v1981, %v1979
        %v2022 = vpack.c.b16 %v1984, %v1982
        %v2023 = vpack.c.b16 %v1985, %v1983
        %v2024 = vpack.c.b16 %v1988, %v1986
        %v2025 = vpack.c.b16 %v1989, %v1987
        %v2026 = vpack.c.b16 %v1992, %v1990
        %v2027 = vpack.c.b16 %v1993, %v1991
        %v2028 = vpack.c.b16 %v1996, %v1994
        %v2029 = vpack.c.b16 %v1997, %v1995
        %2062 = vmatprep.subr.bf16.mxu0 %v1999
        %2063 = vmatpush1.bf16.msra.mxu0 %v1998
        %2064 = vmatprep.subr.bf16.mxu0 %v2001
        %2065 = vmatpush1.bf16.msra.mxu0 %v2000
        %2066 = vmatprep.subr.bf16.mxu0 %v2003
        %2067 = vmatpush1.bf16.msra.mxu0 %v2002
        %2068 = vmatprep.subr.bf16.mxu0 %v2005
        %2069 = vmatpush1.bf16.msra.mxu0 %v2004
        %2070 = vmatprep.subr.bf16.mxu0 %v2007
        %2071 = vmatpush1.bf16.msra.mxu0 %v2006
        %2072 = vmatprep.subr.bf16.mxu0 %v2009
        %2073 = vmatpush1.bf16.msra.mxu0 %v2008
        %2074 = vmatprep.subr.bf16.mxu0 %v2011
        %2075 = vmatpush1.bf16.msra.mxu0 %v2010
        %2076 = vmatprep.subr.bf16.mxu0 %v2013
        %2077 = vmatpush1.bf16.msra.mxu0 %v2012
        %2078 = vmatprep.subr.bf16.mxu0 %v2015
        %2079 = vmatpush1.bf16.msra.mxu0 %v2014
        %2080 = vmatprep.subr.bf16.mxu0 %v2017
        %2081 = vmatpush1.bf16.msra.mxu0 %v2016
        %2082 = vmatprep.subr.bf16.mxu0 %v2019
        %2083 = vmatpush1.bf16.msra.mxu0 %v2018
        %2084 = vmatprep.subr.bf16.mxu0 %v2021
        %2085 = vmatpush1.bf16.msra.mxu0 %v2020
        %2086 = vmatprep.subr.bf16.mxu0 %v2023
        %2087 = vmatpush1.bf16.msra.mxu0 %v2022
        %2088 = vmatprep.subr.bf16.mxu0 %v2025
        %2089 = vmatpush1.bf16.msra.mxu0 %v2024
        %2090 = vmatprep.subr.bf16.mxu0 %v2027
        %2091 = vmatpush1.bf16.msra.mxu0 %v2026
        %2092 = vmatprep.subr.bf16.mxu0 %v2029
        %2093 = vmatpush1.bf16.msra.mxu0 %v2028
        %2094 = vmatprep.mubr.bf16.mxu0 %v1855
        %2095 = vmatmul.mubr.bf16.gmra.mrb[0].mxu0 %v1854
        %v2096 = vpop.f32.mrb[0].mxu0
        %v2097 = vadd.f32 %v1895, %v2096
        %v2098 = vpop.f32.mrb[0].mxu0
        %v2099 = vadd.f32 %v1899, %v2098
        %v2100 = vpop.f32.mrb[0].mxu0
        %v2101 = vadd.f32 %v1895, %v2100
        %v2102 = vpop.f32.mrb[0].mxu0
        %v2103 = vadd.f32 %v1899, %v2102
        %2104 = vmatprep.mubr.bf16.mxu0 %v1857
        %2105 = vmatmul.mubr.bf16.gmra.mrb[0].mxu0 %v1856
        %v2106 = vpop.f32.mrb[0].mxu0
        %v2107 = vadd.f32 %v1895, %v2106
        %v2108 = vpop.f32.mrb[0].mxu0
        %v2109 = vadd.f32 %v1899, %v2108
        %v2110 = vpop.f32.mrb[0].mxu0
        %v2111 = vadd.f32 %v1895, %v2110
        %v2112 = vpop.f32.mrb[0].mxu0
        %v2113 = vadd.f32 %v1899, %v2112
        %2114 = vdwg.mxu0
        %vm2115 = vcmp.ge.f32.partialorder %v2097, 0.0
        %vm2116 = vcmp.ge.f32.partialorder %v2099, 0.0
        %vm2117 = vcmp.ge.f32.partialorder %v2101, 0.0
        %vm2118 = vcmp.ge.f32.partialorder %v2103, 0.0
        %vm2119 = vcmp.ge.f32.partialorder %v2107, 0.0
        %vm2120 = vcmp.ge.f32.partialorder %v2109, 0.0
        %vm2121 = vcmp.ge.f32.partialorder %v2111, 0.0
        %vm2122 = vcmp.ge.f32.partialorder %v2113, 0.0
        %v2123 = vmul.f32 %v2097, 0.01
        %v2124 = vmul.f32 %v2099, 0.01
        %v2125 = vmul.f32 %v2101, 0.01
        %v2126 = vmul.f32 %v2103, 0.01
        %v2127 = vmul.f32 %v2107, 0.01
        %v2128 = vmul.f32 %v2109, 0.01
        %v2129 = vmul.f32 %v2111, 0.01
        %v2130 = vmul.f32 %v2113, 0.01
        %v2131 = vsel %vm2115, %v2097, %v2123
        %v2132 = vsel %vm2116, %v2099, %v2124
        %v2133 = vsel %vm2117, %v2101, %v2125
        %v2134 = vsel %vm2118, %v2103, %v2126
        %v2135 = vsel %vm2119, %v2107, %v2127
        %v2136 = vsel %vm2120, %v2109, %v2128
        %v2137 = vsel %vm2121, %v2111, %v2129
        %v2138 = vsel %vm2122, %v2113, %v2130
        %v2139 = vadd.f32 %v2131, %v1561
        %v2140 = vadd.f32 %v2132, %v1562
        %v2141 = vadd.f32 %v2133, %v1563
        %v2142 = vadd.f32 %v2134, %v1564
        %v2143 = vadd.f32 %v2135, %v1565
        %v2144 = vadd.f32 %v2136, %v1566
        %v2145 = vadd.f32 %v2137, %v1567
        %v2146 = vadd.f32 %v2138, %v1568
        %v2147 = vpack.c.bf16 %v2141, %v2139
        %v2148 = vpack.c.bf16 %v2142, %v2140
        %v2149 = vpack.c.bf16 %v2145, %v2143
        %v2150 = vpack.c.bf16 %v2146, %v2144
        %v2151 = vld [vmem:[#allocation14] sm:$0xff]
        %v2152 = vld [vmem:[#allocation14 + $0x8] sm:$0xff]
        %v2153 = vld [vmem:[#allocation14 + $0x10] sm:$0xff]
        %v2154 = vld [vmem:[#allocation14 + $0x18] sm:$0xff]
        %v2155 = vld [vmem:[#allocation14 + $0x20] sm:$0xff]
        %v2156 = vld [vmem:[#allocation14 + $0x28] sm:$0xff]
        %v2157 = vld [vmem:[#allocation14 + $0x30] sm:$0xff]
        %v2158 = vld [vmem:[#allocation14 + $0x38] sm:$0xff]
        %v2159 = vld [vmem:[#allocation14 + $0x40] sm:$0xff]
        %v2160 = vld [vmem:[#allocation14 + $0x48] sm:$0xff]
        %v2161 = vld [vmem:[#allocation14 + $0x50] sm:$0xff]
        %v2162 = vld [vmem:[#allocation14 + $0x58] sm:$0xff]
        %v2163 = vld [vmem:[#allocation14 + $0x60] sm:$0xff]
        %v2164 = vld [vmem:[#allocation14 + $0x68] sm:$0xff]
        %v2165 = vld [vmem:[#allocation14 + $0x70] sm:$0xff]
        %v2166 = vld [vmem:[#allocation14 + $0x78] sm:$0xff]
        %v2167 = vld [vmem:[#allocation14 + $0x80] sm:$0xff]
        %v2168 = vld [vmem:[#allocation14 + $0x88] sm:$0xff]
        %v2169 = vld [vmem:[#allocation14 + $0x90] sm:$0xff]
        %v2170 = vld [vmem:[#allocation14 + $0x98] sm:$0xff]
        %v2171 = vld [vmem:[#allocation14 + $0xa0] sm:$0xff]
        %v2172 = vld [vmem:[#allocation14 + $0xa8] sm:$0xff]
        %v2173 = vld [vmem:[#allocation14 + $0xb0] sm:$0xff]
        %v2174 = vld [vmem:[#allocation14 + $0xb8] sm:$0xff]
        %v2175 = vld [vmem:[#allocation14 + $0xc0] sm:$0xff]
        %v2176 = vld [vmem:[#allocation14 + $0xc8] sm:$0xff]
        %v2177 = vld [vmem:[#allocation14 + $0xd0] sm:$0xff]
        %v2178 = vld [vmem:[#allocation14 + $0xd8] sm:$0xff]
        %v2179 = vld [vmem:[#allocation14 + $0xe0] sm:$0xff]
        %v2180 = vld [vmem:[#allocation14 + $0xe8] sm:$0xff]
        %v2181 = vld [vmem:[#allocation14 + $0xf0] sm:$0xff]
        %v2182 = vld [vmem:[#allocation14 + $0xf8] sm:$0xff]
        %v2183 = vld [vmem:[%s12] sm:$0x3]
        %v2185 = vlaneseq
        %v2186 = vshrl.u32 %v2185, 7
        %v2187 = vsub.s32 0, %v2186
        %v2188 = vrot.slane %v2183, %v2187
        %v2189 = vlaneseq
        %v2190 = vshrl.u32 %v2189, 7
        %v2191 = vsub.s32 1, %v2190
        %v2192 = vrot.slane %v2183, %v2191
        %v2227 = vunpack.c.l.b16 %v2151
        %v2228 = vunpack.c.h.b16 %v2151
        %v2229 = vunpack.c.l.b16 %v2152
        %v2230 = vunpack.c.h.b16 %v2152
        %v2231 = vunpack.c.l.b16 %v2153
        %v2232 = vunpack.c.h.b16 %v2153
        %v2233 = vunpack.c.l.b16 %v2154
        %v2234 = vunpack.c.h.b16 %v2154
        %v2235 = vunpack.c.l.b16 %v2155
        %v2236 = vunpack.c.h.b16 %v2155
        %v2237 = vunpack.c.l.b16 %v2156
        %v2238 = vunpack.c.h.b16 %v2156
        %v2239 = vunpack.c.l.b16 %v2157
        %v2240 = vunpack.c.h.b16 %v2157
        %v2241 = vunpack.c.l.b16 %v2158
        %v2242 = vunpack.c.h.b16 %v2158
        %v2243 = vunpack.c.l.b16 %v2159
        %v2244 = vunpack.c.h.b16 %v2159
        %v2245 = vunpack.c.l.b16 %v2160
        %v2246 = vunpack.c.h.b16 %v2160
        %v2247 = vunpack.c.l.b16 %v2161
        %v2248 = vunpack.c.h.b16 %v2161
        %v2249 = vunpack.c.l.b16 %v2162
        %v2250 = vunpack.c.h.b16 %v2162
        %v2251 = vunpack.c.l.b16 %v2163
        %v2252 = vunpack.c.h.b16 %v2163
        %v2253 = vunpack.c.l.b16 %v2164
        %v2254 = vunpack.c.h.b16 %v2164
        %v2255 = vunpack.c.l.b16 %v2165
        %v2256 = vunpack.c.h.b16 %v2165
        %v2257 = vunpack.c.l.b16 %v2166
        %v2258 = vunpack.c.h.b16 %v2166
        %v2259 = vunpack.c.l.b16 %v2167
        %v2260 = vunpack.c.h.b16 %v2167
        %v2261 = vunpack.c.l.b16 %v2168
        %v2262 = vunpack.c.h.b16 %v2168
        %v2263 = vunpack.c.l.b16 %v2169
        %v2264 = vunpack.c.h.b16 %v2169
        %v2265 = vunpack.c.l.b16 %v2170
        %v2266 = vunpack.c.h.b16 %v2170
        %v2267 = vunpack.c.l.b16 %v2171
        %v2268 = vunpack.c.h.b16 %v2171
        %v2269 = vunpack.c.l.b16 %v2172
        %v2270 = vunpack.c.h.b16 %v2172
        %v2271 = vunpack.c.l.b16 %v2173
        %v2272 = vunpack.c.h.b16 %v2173
        %v2273 = vunpack.c.l.b16 %v2174
        %v2274 = vunpack.c.h.b16 %v2174
        %v2275 = vunpack.c.l.b16 %v2175
        %v2276 = vunpack.c.h.b16 %v2175
        %v2277 = vunpack.c.l.b16 %v2176
        %v2278 = vunpack.c.h.b16 %v2176
        %v2279 = vunpack.c.l.b16 %v2177
        %v2280 = vunpack.c.h.b16 %v2177
        %v2281 = vunpack.c.l.b16 %v2178
        %v2282 = vunpack.c.h.b16 %v2178
        %v2283 = vunpack.c.l.b16 %v2179
        %v2284 = vunpack.c.h.b16 %v2179
        %v2285 = vunpack.c.l.b16 %v2180
        %v2286 = vunpack.c.h.b16 %v2180
        %v2287 = vunpack.c.l.b16 %v2181
        %v2288 = vunpack.c.h.b16 %v2181
        %v2289 = vunpack.c.l.b16 %v2182
        %v2290 = vunpack.c.h.b16 %v2182
        %v2291 = vpack.c.b16 %v2229, %v2227
        %v2292 = vpack.c.b16 %v2230, %v2228
        %v2293 = vpack.c.b16 %v2233, %v2231
        %v2294 = vpack.c.b16 %v2234, %v2232
        %v2295 = vpack.c.b16 %v2237, %v2235
        %v2296 = vpack.c.b16 %v2238, %v2236
        %v2297 = vpack.c.b16 %v2241, %v2239
        %v2298 = vpack.c.b16 %v2242, %v2240
        %v2299 = vpack.c.b16 %v2245, %v2243
        %v2300 = vpack.c.b16 %v2246, %v2244
        %v2301 = vpack.c.b16 %v2249, %v2247
        %v2302 = vpack.c.b16 %v2250, %v2248
        %v2303 = vpack.c.b16 %v2253, %v2251
        %v2304 = vpack.c.b16 %v2254, %v2252
        %v2305 = vpack.c.b16 %v2257, %v2255
        %v2306 = vpack.c.b16 %v2258, %v2256
        %v2307 = vpack.c.b16 %v2261, %v2259
        %v2308 = vpack.c.b16 %v2262, %v2260
        %v2309 = vpack.c.b16 %v2265, %v2263
        %v2310 = vpack.c.b16 %v2266, %v2264
        %v2311 = vpack.c.b16 %v2269, %v2267
        %v2312 = vpack.c.b16 %v2270, %v2268
        %v2313 = vpack.c.b16 %v2273, %v2271
        %v2314 = vpack.c.b16 %v2274, %v2272
        %v2315 = vpack.c.b16 %v2277, %v2275
        %v2316 = vpack.c.b16 %v2278, %v2276
        %v2317 = vpack.c.b16 %v2281, %v2279
        %v2318 = vpack.c.b16 %v2282, %v2280
        %v2319 = vpack.c.b16 %v2285, %v2283
        %v2320 = vpack.c.b16 %v2286, %v2284
        %v2321 = vpack.c.b16 %v2289, %v2287
        %v2322 = vpack.c.b16 %v2290, %v2288
        %2355 = vmatprep.subr.bf16.mxu0 %v2292
        %2356 = vmatpush1.bf16.msra.mxu0 %v2291
        %2357 = vmatprep.subr.bf16.mxu0 %v2294
        %2358 = vmatpush1.bf16.msra.mxu0 %v2293
        %2359 = vmatprep.subr.bf16.mxu0 %v2296
        %2360 = vmatpush1.bf16.msra.mxu0 %v2295
        %2361 = vmatprep.subr.bf16.mxu0 %v2298
        %2362 = vmatpush1.bf16.msra.mxu0 %v2297
        %2363 = vmatprep.subr.bf16.mxu0 %v2300
        %2364 = vmatpush1.bf16.msra.mxu0 %v2299
        %2365 = vmatprep.subr.bf16.mxu0 %v2302
        %2366 = vmatpush1.bf16.msra.mxu0 %v2301
        %2367 = vmatprep.subr.bf16.mxu0 %v2304
        %2368 = vmatpush1.bf16.msra.mxu0 %v2303
        %2369 = vmatprep.subr.bf16.mxu0 %v2306
        %2370 = vmatpush1.bf16.msra.mxu0 %v2305
        %2371 = vmatprep.subr.bf16.mxu0 %v2308
        %2372 = vmatpush1.bf16.msra.mxu0 %v2307
        %2373 = vmatprep.subr.bf16.mxu0 %v2310
        %2374 = vmatpush1.bf16.msra.mxu0 %v2309
        %2375 = vmatprep.subr.bf16.mxu0 %v2312
        %2376 = vmatpush1.bf16.msra.mxu0 %v2311
        %2377 = vmatprep.subr.bf16.mxu0 %v2314
        %2378 = vmatpush1.bf16.msra.mxu0 %v2313
        %2379 = vmatprep.subr.bf16.mxu0 %v2316
        %2380 = vmatpush1.bf16.msra.mxu0 %v2315
        %2381 = vmatprep.subr.bf16.mxu0 %v2318
        %2382 = vmatpush1.bf16.msra.mxu0 %v2317
        %2383 = vmatprep.subr.bf16.mxu0 %v2320
        %2384 = vmatpush1.bf16.msra.mxu0 %v2319
        %2385 = vmatprep.subr.bf16.mxu0 %v2322
        %2386 = vmatpush1.bf16.msra.mxu0 %v2321
        %2387 = vmatprep.mubr.bf16.mxu0 %v2148
        %2388 = vmatmul.mubr.bf16.gmra.mrb[0].mxu0 %v2147
        %v2389 = vpop.f32.mrb[0].mxu0
        %v2390 = vadd.f32 %v2188, %v2389
        %v2391 = vpop.f32.mrb[0].mxu0
        %v2392 = vadd.f32 %v2192, %v2391
        %v2393 = vpop.f32.mrb[0].mxu0
        %v2394 = vadd.f32 %v2188, %v2393
        %v2395 = vpop.f32.mrb[0].mxu0
        %v2396 = vadd.f32 %v2192, %v2395
        %2397 = vmatprep.mubr.bf16.mxu0 %v2150
        %2398 = vmatmul.mubr.bf16.gmra.mrb[0].mxu0 %v2149
        %v2399 = vpop.f32.mrb[0].mxu0
        %v2400 = vadd.f32 %v2188, %v2399
        %v2401 = vpop.f32.mrb[0].mxu0
        %v2402 = vadd.f32 %v2192, %v2401
        %v2403 = vpop.f32.mrb[0].mxu0
        %v2404 = vadd.f32 %v2188, %v2403
        %v2405 = vpop.f32.mrb[0].mxu0
        %v2406 = vadd.f32 %v2192, %v2405
        %2407 = vdwg.mxu0
        %vm2408 = vcmp.ge.f32.partialorder %v2390, 0.0
        %vm2409 = vcmp.ge.f32.partialorder %v2392, 0.0
        %vm2410 = vcmp.ge.f32.partialorder %v2394, 0.0
        %vm2411 = vcmp.ge.f32.partialorder %v2396, 0.0
        %vm2412 = vcmp.ge.f32.partialorder %v2400, 0.0
        %vm2413 = vcmp.ge.f32.partialorder %v2402, 0.0
        %vm2414 = vcmp.ge.f32.partialorder %v2404, 0.0
        %vm2415 = vcmp.ge.f32.partialorder %v2406, 0.0
        %v2416 = vmul.f32 %v2390, 0.01
        %v2417 = vmul.f32 %v2392, 0.01
        %v2418 = vmul.f32 %v2394, 0.01
        %v2419 = vmul.f32 %v2396, 0.01
        %v2420 = vmul.f32 %v2400, 0.01
        %v2421 = vmul.f32 %v2402, 0.01
        %v2422 = vmul.f32 %v2404, 0.01
        %v2423 = vmul.f32 %v2406, 0.01
        %v2424 = vsel %vm2408, %v2390, %v2416
        %v2425 = vsel %vm2409, %v2392, %v2417
        %v2426 = vsel %vm2410, %v2394, %v2418
        %v2427 = vsel %vm2411, %v2396, %v2419
        %v2428 = vsel %vm2412, %v2400, %v2420
        %v2429 = vsel %vm2413, %v2402, %v2421
        %v2430 = vsel %vm2414, %v2404, %v2422
        %v2431 = vsel %vm2415, %v2406, %v2423
        %v2432 = vpack.c.bf16 %v2426, %v2424
        %v2433 = vpack.c.bf16 %v2427, %v2425
        %v2434 = vpack.c.bf16 %v2430, %v2428
        %v2435 = vpack.c.bf16 %v2431, %v2429
        %v2436 = vld [vmem:[#allocation16] sm:$0xff]
        %v2437 = vld [vmem:[#allocation16 + $0x8] sm:$0xff]
        %v2438 = vld [vmem:[#allocation16 + $0x10] sm:$0xff]
        %v2439 = vld [vmem:[#allocation16 + $0x18] sm:$0xff]
        %v2440 = vld [vmem:[#allocation16 + $0x20] sm:$0xff]
        %v2441 = vld [vmem:[#allocation16 + $0x28] sm:$0xff]
        %v2442 = vld [vmem:[#allocation16 + $0x30] sm:$0xff]
        %v2443 = vld [vmem:[#allocation16 + $0x38] sm:$0xff]
        %v2444 = vld [vmem:[#allocation16 + $0x40] sm:$0xff]
        %v2445 = vld [vmem:[#allocation16 + $0x48] sm:$0xff]
        %v2446 = vld [vmem:[#allocation16 + $0x50] sm:$0xff]
        %v2447 = vld [vmem:[#allocation16 + $0x58] sm:$0xff]
        %v2448 = vld [vmem:[#allocation16 + $0x60] sm:$0xff]
        %v2449 = vld [vmem:[#allocation16 + $0x68] sm:$0xff]
        %v2450 = vld [vmem:[#allocation16 + $0x70] sm:$0xff]
        %v2451 = vld [vmem:[#allocation16 + $0x78] sm:$0xff]
        %v2452 = vld [vmem:[#allocation16 + $0x80] sm:$0xff]
        %v2453 = vld [vmem:[#allocation16 + $0x88] sm:$0xff]
        %v2454 = vld [vmem:[#allocation16 + $0x90] sm:$0xff]
        %v2455 = vld [vmem:[#allocation16 + $0x98] sm:$0xff]
        %v2456 = vld [vmem:[#allocation16 + $0xa0] sm:$0xff]
        %v2457 = vld [vmem:[#allocation16 + $0xa8] sm:$0xff]
        %v2458 = vld [vmem:[#allocation16 + $0xb0] sm:$0xff]
        %v2459 = vld [vmem:[#allocation16 + $0xb8] sm:$0xff]
        %v2460 = vld [vmem:[#allocation16 + $0xc0] sm:$0xff]
        %v2461 = vld [vmem:[#allocation16 + $0xc8] sm:$0xff]
        %v2462 = vld [vmem:[#allocation16 + $0xd0] sm:$0xff]
        %v2463 = vld [vmem:[#allocation16 + $0xd8] sm:$0xff]
        %v2464 = vld [vmem:[#allocation16 + $0xe0] sm:$0xff]
        %v2465 = vld [vmem:[#allocation16 + $0xe8] sm:$0xff]
        %v2466 = vld [vmem:[#allocation16 + $0xf0] sm:$0xff]
        %v2467 = vld [vmem:[#allocation16 + $0xf8] sm:$0xff]
        %v2468 = vld [vmem:[%s14] sm:$0x3]
        %v2470 = vlaneseq
        %v2471 = vshrl.u32 %v2470, 7
        %v2472 = vsub.s32 0, %v2471
        %v2473 = vrot.slane %v2468, %v2472
        %v2474 = vlaneseq
        %v2475 = vshrl.u32 %v2474, 7
        %v2476 = vsub.s32 1, %v2475
        %v2477 = vrot.slane %v2468, %v2476
        %v2512 = vunpack.c.l.b16 %v2436
        %v2513 = vunpack.c.h.b16 %v2436
        %v2514 = vunpack.c.l.b16 %v2437
        %v2515 = vunpack.c.h.b16 %v2437
        %v2516 = vunpack.c.l.b16 %v2438
        %v2517 = vunpack.c.h.b16 %v2438
        %v2518 = vunpack.c.l.b16 %v2439
        %v2519 = vunpack.c.h.b16 %v2439
        %v2520 = vunpack.c.l.b16 %v2440
        %v2521 = vunpack.c.h.b16 %v2440
        %v2522 = vunpack.c.l.b16 %v2441
        %v2523 = vunpack.c.h.b16 %v2441
        %v2524 = vunpack.c.l.b16 %v2442
        %v2525 = vunpack.c.h.b16 %v2442
        %v2526 = vunpack.c.l.b16 %v2443
        %v2527 = vunpack.c.h.b16 %v2443
        %v2528 = vunpack.c.l.b16 %v2444
        %v2529 = vunpack.c.h.b16 %v2444
        %v2530 = vunpack.c.l.b16 %v2445
        %v2531 = vunpack.c.h.b16 %v2445
        %v2532 = vunpack.c.l.b16 %v2446
        %v2533 = vunpack.c.h.b16 %v2446
        %v2534 = vunpack.c.l.b16 %v2447
        %v2535 = vunpack.c.h.b16 %v2447
        %v2536 = vunpack.c.l.b16 %v2448
        %v2537 = vunpack.c.h.b16 %v2448
        %v2538 = vunpack.c.l.b16 %v2449
        %v2539 = vunpack.c.h.b16 %v2449
        %v2540 = vunpack.c.l.b16 %v2450
        %v2541 = vunpack.c.h.b16 %v2450
        %v2542 = vunpack.c.l.b16 %v2451
        %v2543 = vunpack.c.h.b16 %v2451
        %v2544 = vunpack.c.l.b16 %v2452
        %v2545 = vunpack.c.h.b16 %v2452
        %v2546 = vunpack.c.l.b16 %v2453
        %v2547 = vunpack.c.h.b16 %v2453
        %v2548 = vunpack.c.l.b16 %v2454
        %v2549 = vunpack.c.h.b16 %v2454
        %v2550 = vunpack.c.l.b16 %v2455
        %v2551 = vunpack.c.h.b16 %v2455
        %v2552 = vunpack.c.l.b16 %v2456
        %v2553 = vunpack.c.h.b16 %v2456
        %v2554 = vunpack.c.l.b16 %v2457
        %v2555 = vunpack.c.h.b16 %v2457
        %v2556 = vunpack.c.l.b16 %v2458
        %v2557 = vunpack.c.h.b16 %v2458
        %v2558 = vunpack.c.l.b16 %v2459
        %v2559 = vunpack.c.h.b16 %v2459
        %v2560 = vunpack.c.l.b16 %v2460
        %v2561 = vunpack.c.h.b16 %v2460
        %v2562 = vunpack.c.l.b16 %v2461
        %v2563 = vunpack.c.h.b16 %v2461
        %v2564 = vunpack.c.l.b16 %v2462
        %v2565 = vunpack.c.h.b16 %v2462
        %v2566 = vunpack.c.l.b16 %v2463
        %v2567 = vunpack.c.h.b16 %v2463
        %v2568 = vunpack.c.l.b16 %v2464
        %v2569 = vunpack.c.h.b16 %v2464
        %v2570 = vunpack.c.l.b16 %v2465
        %v2571 = vunpack.c.h.b16 %v2465
        %v2572 = vunpack.c.l.b16 %v2466
        %v2573 = vunpack.c.h.b16 %v2466
        %v2574 = vunpack.c.l.b16 %v2467
        %v2575 = vunpack.c.h.b16 %v2467
        %v2576 = vpack.c.b16 %v2514, %v2512
        %v2577 = vpack.c.b16 %v2515, %v2513
        %v2578 = vpack.c.b16 %v2518, %v2516
        %v2579 = vpack.c.b16 %v2519, %v2517
        %v2580 = vpack.c.b16 %v2522, %v2520
        %v2581 = vpack.c.b16 %v2523, %v2521
        %v2582 = vpack.c.b16 %v2526, %v2524
        %v2583 = vpack.c.b16 %v2527, %v2525
        %v2584 = vpack.c.b16 %v2530, %v2528
        %v2585 = vpack.c.b16 %v2531, %v2529
        %v2586 = vpack.c.b16 %v2534, %v2532
        %v2587 = vpack.c.b16 %v2535, %v2533
        %v2588 = vpack.c.b16 %v2538, %v2536
        %v2589 = vpack.c.b16 %v2539, %v2537
        %v2590 = vpack.c.b16 %v2542, %v2540
        %v2591 = vpack.c.b16 %v2543, %v2541
        %v2592 = vpack.c.b16 %v2546, %v2544
        %v2593 = vpack.c.b16 %v2547, %v2545
        %v2594 = vpack.c.b16 %v2550, %v2548
        %v2595 = vpack.c.b16 %v2551, %v2549
        %v2596 = vpack.c.b16 %v2554, %v2552
        %v2597 = vpack.c.b16 %v2555, %v2553
        %v2598 = vpack.c.b16 %v2558, %v2556
        %v2599 = vpack.c.b16 %v2559, %v2557
        %v2600 = vpack.c.b16 %v2562, %v2560
        %v2601 = vpack.c.b16 %v2563, %v2561
        %v2602 = vpack.c.b16 %v2566, %v2564
        %v2603 = vpack.c.b16 %v2567, %v2565
        %v2604 = vpack.c.b16 %v2570, %v2568
        %v2605 = vpack.c.b16 %v2571, %v2569
        %v2606 = vpack.c.b16 %v2574, %v2572
        %v2607 = vpack.c.b16 %v2575, %v2573
        %2640 = vmatprep.subr.bf16.mxu0 %v2577
        %2641 = vmatpush1.bf16.msra.mxu0 %v2576
        %2642 = vmatprep.subr.bf16.mxu0 %v2579
        %2643 = vmatpush1.bf16.msra.mxu0 %v2578
        %2644 = vmatprep.subr.bf16.mxu0 %v2581
        %2645 = vmatpush1.bf16.msra.mxu0 %v2580
        %2646 = vmatprep.subr.bf16.mxu0 %v2583
        %2647 = vmatpush1.bf16.msra.mxu0 %v2582
        %2648 = vmatprep.subr.bf16.mxu0 %v2585
        %2649 = vmatpush1.bf16.msra.mxu0 %v2584
        %2650 = vmatprep.subr.bf16.mxu0 %v2587
        %2651 = vmatpush1.bf16.msra.mxu0 %v2586
        %2652 = vmatprep.subr.bf16.mxu0 %v2589
        %2653 = vmatpush1.bf16.msra.mxu0 %v2588
        %2654 = vmatprep.subr.bf16.mxu0 %v2591
        %2655 = vmatpush1.bf16.msra.mxu0 %v2590
        %2656 = vmatprep.subr.bf16.mxu0 %v2593
        %2657 = vmatpush1.bf16.msra.mxu0 %v2592
        %2658 = vmatprep.subr.bf16.mxu0 %v2595
        %2659 = vmatpush1.bf16.msra.mxu0 %v2594
        %2660 = vmatprep.subr.bf16.mxu0 %v2597
        %2661 = vmatpush1.bf16.msra.mxu0 %v2596
        %2662 = vmatprep.subr.bf16.mxu0 %v2599
        %2663 = vmatpush1.bf16.msra.mxu0 %v2598
        %2664 = vmatprep.subr.bf16.mxu0 %v2601
        %2665 = vmatpush1.bf16.msra.mxu0 %v2600
        %2666 = vmatprep.subr.bf16.mxu0 %v2603
        %2667 = vmatpush1.bf16.msra.mxu0 %v2602
        %2668 = vmatprep.subr.bf16.mxu0 %v2605
        %2669 = vmatpush1.bf16.msra.mxu0 %v2604
        %2670 = vmatprep.subr.bf16.mxu0 %v2607
        %2671 = vmatpush1.bf16.msra.mxu0 %v2606
        %2672 = vmatprep.mubr.bf16.mxu0 %v2433
        %2673 = vmatmul.mubr.bf16.gmra.mrb[0].mxu0 %v2432
        %v2674 = vpop.f32.mrb[0].mxu0
        %v2675 = vadd.f32 %v2473, %v2674
        %v2676 = vpop.f32.mrb[0].mxu0
        %v2677 = vadd.f32 %v2477, %v2676
        %v2678 = vpop.f32.mrb[0].mxu0
        %v2679 = vadd.f32 %v2473, %v2678
        %v2680 = vpop.f32.mrb[0].mxu0
        %v2681 = vadd.f32 %v2477, %v2680
        %2682 = vmatprep.mubr.bf16.mxu0 %v2435
        %2683 = vmatmul.mubr.bf16.gmra.mrb[0].mxu0 %v2434
        %v2684 = vpop.f32.mrb[0].mxu0
        %v2685 = vadd.f32 %v2473, %v2684
        %v2686 = vpop.f32.mrb[0].mxu0
        %v2687 = vadd.f32 %v2477, %v2686
        %v2688 = vpop.f32.mrb[0].mxu0
        %v2689 = vadd.f32 %v2473, %v2688
        %v2690 = vpop.f32.mrb[0].mxu0
        %v2691 = vadd.f32 %v2477, %v2690
        %2692 = vdwg.mxu0
        %vm2693 = vcmp.ge.f32.partialorder %v2675, 0.0
        %vm2694 = vcmp.ge.f32.partialorder %v2677, 0.0
        %vm2695 = vcmp.ge.f32.partialorder %v2679, 0.0
        %vm2696 = vcmp.ge.f32.partialorder %v2681, 0.0
        %vm2697 = vcmp.ge.f32.partialorder %v2685, 0.0
        %vm2698 = vcmp.ge.f32.partialorder %v2687, 0.0
        %vm2699 = vcmp.ge.f32.partialorder %v2689, 0.0
        %vm2700 = vcmp.ge.f32.partialorder %v2691, 0.0
        %v2701 = vmul.f32 %v2675, 0.01
        %v2702 = vmul.f32 %v2677, 0.01
        %v2703 = vmul.f32 %v2679, 0.01
        %v2704 = vmul.f32 %v2681, 0.01
        %v2705 = vmul.f32 %v2685, 0.01
        %v2706 = vmul.f32 %v2687, 0.01
        %v2707 = vmul.f32 %v2689, 0.01
        %v2708 = vmul.f32 %v2691, 0.01
        %v2709 = vsel %vm2693, %v2675, %v2701
        %v2710 = vsel %vm2694, %v2677, %v2702
        %v2711 = vsel %vm2695, %v2679, %v2703
        %v2712 = vsel %vm2696, %v2681, %v2704
        %v2713 = vsel %vm2697, %v2685, %v2705
        %v2714 = vsel %vm2698, %v2687, %v2706
        %v2715 = vsel %vm2699, %v2689, %v2707
        %v2716 = vsel %vm2700, %v2691, %v2708
        %v2717 = vadd.f32 %v2709, %v2139
        %v2718 = vadd.f32 %v2710, %v2140
        %v2719 = vadd.f32 %v2711, %v2141
        %v2720 = vadd.f32 %v2712, %v2142
        %v2721 = vadd.f32 %v2713, %v2143
        %v2722 = vadd.f32 %v2714, %v2144
        %v2723 = vadd.f32 %v2715, %v2145
        %v2724 = vadd.f32 %v2716, %v2146
        %v2725 = vld [vmem:[%s15] sm:$0x3]
        %v2727 = vlaneseq
        %v2728 = vshrl.u32 %v2727, 7
        %v2729 = vsub.s32 0, %v2728
        %v2730 = vrot.slane %v2725, %v2729
        %v2731 = vlaneseq
        %v2732 = vshrl.u32 %v2731, 7
        %v2733 = vsub.s32 1, %v2732
        %v2734 = vrot.slane %v2725, %v2733
        %v2737 = vmul.f32 %v2717, %v2730
        %v2738 = vmul.f32 %v2718, %v2734
        %v2739 = vmul.f32 %v2719, %v2730
        %v2740 = vmul.f32 %v2720, %v2734
        %v2741 = vmul.f32 %v2721, %v2730
        %v2742 = vmul.f32 %v2722, %v2734
        %v2743 = vmul.f32 %v2723, %v2730
        %v2744 = vmul.f32 %v2724, %v2734
        %v2745 = vadd.f32 %v2737, %v2738
        %2746 = vadd.xlane.f32.xlu0 %v2745
        %v2747 = vpop.xlane.xlu0 %2746
        %v2748 = vadd.f32 %v2739, %v2740
        %2749 = vadd.xlane.f32.xlu0 %v2748
        %v2750 = vpop.xlane.xlu0 %2749
        %v2751 = vadd.f32 %v2741, %v2742
        %2752 = vadd.xlane.f32.xlu0 %v2751
        %v2753 = vpop.xlane.xlu0 %2752
        %v2754 = vadd.f32 %v2743, %v2744
        %2755 = vadd.xlane.f32.xlu0 %v2754
        %v2756 = vpop.xlane.xlu0 %2755
        %v2757 = vld [vmem:[#allocation2] sm:$0x1]
        %v2759 = vlaneseq
        %v2760 = vshrl.u32 %v2759, 7
        %v2761 = vsub.s32 0, %v2760
        %v2762 = vrot.slane %v2757, %v2761
        %v2764 = vadd.f32 %v2747, %v2762
        %v2765 = vadd.f32 %v2750, %v2762
        %v2766 = vadd.f32 %v2753, %v2762
        %v2767 = vadd.f32 %v2756, %v2762
        %v2768 = vtanh.pop %v2764
        %v2769 = vtanh.pop %v2765
        %v2770 = vtanh.pop %v2766
        %v2771 = vtanh.pop %v2767
        %v2772 = vmul.f32 %v2768, 20000000.0
        %v2773 = vmul.f32 %v2769, 20000000.0
        %v2774 = vmul.f32 %v2770, 20000000.0
        %v2775 = vmul.f32 %v2771, 20000000.0
        %vm2776 = vcmask 7168
        %2777 = vst.msk [vmem:[%s715] sm:$0xff] %vm2776, %v2772
        %2778 = vst.msk [vmem:[%s715 + $0x8] sm:$0xff] %vm2776, %v2773
        %2779 = vst.msk [vmem:[%s715 + $0x10] sm:$0xff] %vm2776, %v2774
        %2780 = vst.msk [vmem:[%s715 + $0x18] sm:$0xff] %vm2776, %v2775
        %s2781 = smul.u32 4, %s39
        %p2782 = scmp.lt.s32.totalorder %s2781, 7
        %s2783 = scalar_select %p2782, %s2781, 7
        %s2784 = smul.addr %s2783, 8
        %s2785 = scalar_lea.vmem %s17, %s2784
        // Predicated region
        $region125: #{tpu_custom_call.1} parent=87 // pred_check
          %p2786 = pneg %p424
        $region126: #{tpu_custom_call.1} parent=87 // pred_check_branch
          %2788 = sbr.rel (%p2786) target = $region128
        $region127: #{tpu_custom_call.1} parent=87 // pred_region
          %s2789 = smul.u32 4, %s39
        $region128: #{tpu_custom_call.1} parent=87 // pred_fallthru
          _
      $region88: #{tpu_custom_call.1} parent=5 // pred_fallthru
        _
      %p2790 = scmp.le.s32.totalorder 2, %s34
      // Predicated region
      $region129: #{tpu_custom_call.1} parent=5 // pred_check
        %p2791 = pneg %p2790
      $region130: #{tpu_custom_call.1} parent=5 // pred_check_branch
        %2793 = sbr.rel (%p2791) target = $region132
      $region131: #{tpu_custom_call.1} parent=5 // pred_region
        %s2794 = ssub.s32 %s34, 2
        // Predicated region
        $region133: #{tpu_custom_call.1} parent=131 // pred_check
          %p2795 = pneg %p430
        $region134: #{tpu_custom_call.1} parent=131 // pred_check_branch
          %2797 = sbr.rel (%p2795) target = $region136
        $region135: #{tpu_custom_call.1} parent=131 // pred_region
          %s2798 = smul.u32 4, %s40
          %p2799 = scmp.lt.s32.totalorder %s2798, 7
          %s2800 = scalar_select %p2799, %s2798, 7
          %s2801 = smul.addr %s2800, 8
          %s2802 = scalar_lea.vmem %s17, %s2801
        $region136: #{tpu_custom_call.1} parent=131 // pred_fallthru
          _
      $region132: #{tpu_custom_call.1} parent=5 // pred_fallthru
        _
    $region6: #{tpu_custom_call.1} parent=1 // loop_footer
      %s38 = sadd.s32 1, %s34
    $region7: #{tpu_custom_call.1} parent=1 // loop_footer_branch
      %33 = sbr.rel target = $region3
    $region8: #{tpu_custom_call.1} parent=1 // loop_exit
      _
    %2803 = vsyncpa [#allocation4], 1
    %s2804 = scalar_lea.sflag [#allocation4], 1
    %2805 = vsyncpa %s2804, 1
    %2806 = vsyncpa [#allocation6], 1
    %s2807 = scalar_lea.sflag [#allocation6], 1
    %2808 = vsyncpa %s2807, 1
    %2809 = vsyncpa [#allocation9], 1
    %2810 = vsyncpa [#allocation12], 1
    %2811 = vsyncpa [#allocation15], 1

</llo_original>
